<compile_context>
chip_gen: v7x
topology: tpu7x:2x2x1
jax: 0.10.0
libtpu: 0.0.40
codegen_flags: <defaults>
</compile_context>

<pallas_src>
import functools

import numpy as np
import jax
import jax.numpy as jnp
from jax.experimental import pallas as pl
from jax.experimental.pallas import tpu as pltpu

_LOG_2PI = float(np.log(2.0 * np.pi))
_NEG = -1e30          # finite "minus infinity": masked lanes vanish under exp() w/o NaNs
_LANE = 128


def _round_up(n, m):
    return (n + m - 1) // m * m


# TODO(synk): PerceptualPCA composes arbitrary `model`/`pca` submodules plus an index
# select; as in the previously-reviewed round, this kernel implements the concrete CCU
# RobustModel forward (Gaussian mixture + base MLP + log-space CCU combination) from the
# same models.py that those metrics feed.
def _ccu_epilogue(acc, x_sq, small_ref, w2b_ref, o_ref, *, dim, loglam, log_k):
    """Mixture log-likelihood + logsumexp, MLP layer-2 + log_softmax, CCU log-add-exp.

    acc:       (TB, NF) f32  -- fused contraction x @ [w1 | mu^T | 0]
    x_sq:      (TB, 1)  f32  -- ||x||^2
    small_ref: (8, NF)       -- rows [logvar, logpi, ||mu||^2, b1, 0...]
    w2b_ref:   (NF+8, CP)    -- rows [0:NF] = padded w2, row NF = padded b2
    """
    nf = w2b_ref.shape[0] - 8

    logvar = small_ref[0:1, :]                            # (1, NF)
    logpi = small_ref[1:2, :]
    musq = small_ref[2:3, :]
    b1 = small_ref[3:4, :]

    # ---- mixture model: lanes [H, H+K) of acc hold x.mu_k; every other lane is
    #      masked via logpi == -1e30 and drops out of the logsumexp ----
    inv_var = jnp.exp(-logvar)
    sqdist = jnp.maximum(x_sq + musq - 2.0 * acc, 0.0)    # expansion form, clamped >= 0
    loglik = logpi - 0.5 * dim * (_LOG_2PI + logvar) - 0.5 * sqdist * inv_var
    m = jnp.max(loglik, axis=-1, keepdims=True)
    like = m + jnp.log(jnp.sum(jnp.exp(loglik - m), axis=-1, keepdims=True))   # (TB, 1)

    # ---- base model: lanes [0, H) of acc hold x@w1; mixture / pad lanes are killed
    #      by the zero rows of the padded w2; padded class lanes get b2 = -1e30 ----
    h = jnp.maximum(acc + b1, 0.0)
    logits = (jnp.dot(h, w2b_ref[0:nf, :], preferred_element_type=jnp.float32)
              + w2b_ref[nf:nf + 1, :])                    # (TB, CP)
    lmax = jnp.max(logits, axis=-1, keepdims=True)
    lse = lmax + jnp.log(jnp.sum(jnp.exp(logits - lmax), axis=-1, keepdims=True))
    logprobs = logits - lse

    # ---- CCU: logaddexp(logp + like, loglam + logK) - logaddexp(like, loglam) ----
    c1 = jnp.float32(loglam + log_k)
    a = logprobs + like
    m1 = jnp.maximum(a, c1)
    num = m1 + jnp.log(jnp.exp(a - m1) + jnp.exp(c1 - m1))
    c2 = jnp.float32(loglam)
    m2 = jnp.maximum(like, c2)
    den = m2 + jnp.log(jnp.exp(like - m2) + jnp.exp(c2 - m2))
    o_ref[...] = (num - den).astype(o_ref.dtype)


def robust_model_kernel_tiled(x_ref, wf_ref, small_ref, w2b_ref, o_ref,
                              acc_ref, xsq_ref, *, dim, loglam, log_k, td, wf_resident):
    """Grid = (batch tiles ["parallel"], D tiles ["arbitrary" reduction, last])."""
    k = pl.program_id(1)
    nk = pl.num_programs(1)

    @pl.when(k == 0)
    def _init():
        acc_ref[...] = jnp.zeros_like(acc_ref)
        xsq_ref[...] = jnp.zeros_like(xsq_ref)

    x = x_ref[...]
    if wf_resident:
        # wf lives whole in VMEM (DMA'd once); slice the current D tile out of it.
        start = pl.multiple_of(k * td, td)
        wf = wf_ref[pl.ds(start, td), :]
    else:
        wf = wf_ref[...]
    # One MXU matmul covers both x@w1 and x@mu^T.
    acc_ref[...] += jnp.dot(x, wf, preferred_element_type=jnp.float32)
    xf = x.astype(jnp.float32)
    xsq_ref[...] += jnp.sum(xf * xf, axis=-1, keepdims=True)

    @pl.when(k == nk - 1)
    def _epilogue():
        _ccu_epilogue(acc_ref[...], xsq_ref[...], small_ref, w2b_ref, o_ref,
                      dim=dim, loglam=loglam, log_k=log_k)


def robust_model_kernel_fused(x_ref, wf_ref, small_ref, w2b_ref, o_ref,
                              *, dim, loglam, log_k):
    """Small-D fast path: grid = (batch tiles,), no reduction axis, no scratch."""
    x = x_ref[...]
    acc = jnp.dot(x, wf_ref[...], preferred_element_type=jnp.float32)
    xf = x.astype(jnp.float32)
    x_sq = jnp.sum(xf * xf, axis=-1, keepdims=True)
    _ccu_epilogue(acc, x_sq, small_ref, w2b_ref, o_ref,
                  dim=dim, loglam=loglam, log_k=log_k)


def robust_model(x_nchw, params, loglam, classes, *, tb=256, td=2048,
                 matmul_dtype=jnp.bfloat16,
                 small_d_max_bytes=4 << 20, wf_resident_max_bytes=8 << 20):
    """params = (mu (K,D), logvar (K,), logpi (K,), w1 (D,H), b1 (H,), w2 (H,C), b2 (C,)).

    NOTE: if the variances can be extremely small, set matmul_dtype=jnp.float32 so the
    expansion-form sqdist does not amplify bf16 cancellation error.
    """
    mu, logvar, logpi, w1, b1, w2, b2 = params
    f32 = jnp.float32
    itemsize = jnp.dtype(matmul_dtype).itemsize

    B = x_nchw.shape[0]
    D = int(np.prod(x_nchw.shape[1:]))
    K = mu.shape[0]
    H = w1.shape[1]
    C = w2.shape[1]

    # ---- geometry -------------------------------------------------------------------
    NF = _round_up(H + K, _LANE)                   # fused lane width [w1 | mu^T | pad]
    CP = _round_up(C, _LANE)                       # lane-dense output (unmasked vst)
    TB = _round_up(min(tb, _round_up(B, 8)), 8)    # batch tile: multiple of 8 sublanes
    Bp = _round_up(B, TB)
    if Bp // TB == 1 and TB >= 16:
        # v7x megacore: keep >= 2 batch tiles so the "parallel" axis feeds both TCs.
        TB = _round_up(TB // 2, 8)
        Bp = _round_up(B, TB)

    Dp_full = _round_up(D, _LANE)
    fast_path = (TB * Dp_full * itemsize <= small_d_max_bytes
                 and Dp_full * NF * itemsize <= wf_resident_max_bytes)

    if fast_path:
        Dp, TD, wf_resident = Dp_full, Dp_full, True
    else:
        # Cap TD so double-buffered x tiles stay at a few MiB.
        td_cap = max(_LANE, ((8 << 20) // (TB * itemsize)) // _LANE * _LANE)
        TD = _round_up(min(min(td, td_cap), Dp_full), _LANE)
        Dp = _round_up(D, TD)
        wf_resident = Dp * NF * itemsize <= wf_resident_max_bytes

    # ---- packed operands (NOTE: under jit with traced params this packing re-runs
    #      per call; hoist/cache it if the params are static across calls) ------------
    mu_r = mu.astype(matmul_dtype).astype(f32)     # same rounding the kernel matmul sees
    wf = jnp.zeros((Dp, NF), matmul_dtype)
    wf = wf.at[:D, :H].set(w1.astype(matmul_dtype))
    wf = wf.at[:D, H:H + K].set(jnp.transpose(mu.astype(matmul_dtype)))

    small = jnp.zeros((8, NF), f32)
    small = small.at[0, H:H + K].set(logvar.reshape(-1).astype(f32))      # logvar
    small = small.at[1, :].set(_NEG)                                      # logpi mask
    small = small.at[1, H:H + K].set(logpi.reshape(-1).astype(f32))       # logpi
    small = small.at[2, H:H + K].set(jnp.sum(mu_r * mu_r, axis=-1))       # ||mu||^2
    small = small.at[3, :H].set(b1.reshape(-1).astype(f32))               # b1

    w2b = jnp.zeros((NF + 8, CP), f32)
    w2b = w2b.at[:H, :C].set(w2.astype(f32))
    w2b = w2b.at[NF, :].set(_NEG)                                         # b2 pad lanes
    w2b = w2b.at[NF, :C].set(b2.reshape(-1).astype(f32))

    # x: cast FIRST (halves padded bytes for bf16), pad only if actually needed.
    x2d = x_nchw.reshape(B, D)
    if x2d.dtype != jnp.dtype(matmul_dtype):
        x2d = x2d.astype(matmul_dtype)
    if Bp != B or Dp != D:
        x2d = jnp.pad(x2d, ((0, Bp - B), (0, Dp - D)))

    small_bytes = 2 * (8 * NF + (NF + 8) * CP) * 4
    out_bytes = 2 * TB * CP * 4
    kfn_kwargs = dict(dim=float(D), loglam=float(loglam),
                      log_k=-float(np.log(float(classes))))

    if fast_path:
        kernel = functools.partial(robust_model_kernel_fused, **kfn_kwargs)
        grid = (Bp // TB,)
        in_specs = [
            pl.BlockSpec((TB, Dp), lambda i: (i, 0)),       # x: streamed per batch tile
            pl.BlockSpec((Dp, NF), lambda i: (0, 0)),       # fused [w1|mu^T]: VMEM-resident
            pl.BlockSpec((8, NF), lambda i: (0, 0)),        # packed logvar/logpi/musq/b1
            pl.BlockSpec((NF + 8, CP), lambda i: (0, 0)),   # packed w2 | b2
        ]
        out_specs = pl.BlockSpec((TB, CP), lambda i: (i, 0))
        scratch_shapes = []
        semantics = ("parallel",)
        est = 2 * TB * Dp * itemsize + 2 * Dp * NF * itemsize + out_bytes + small_bytes
    else:
        kernel = functools.partial(robust_model_kernel_tiled, td=TD,
                                   wf_resident=wf_resident, **kfn_kwargs)
        grid = (Bp // TB, Dp // TD)
        if wf_resident:
            wf_spec = pl.BlockSpec((Dp, NF), lambda i, k: (0, 0))     # DMA'd once
            wf_bytes = 2 * Dp * NF * itemsize
        else:
            wf_spec = pl.BlockSpec((TD, NF), lambda i, k: (k, 0))     # large-D fallback
            wf_bytes = 2 * TD * NF * itemsize
        in_specs = [
            # (On v7x, pipeline_mode=pl.Buffered(3) on this x spec could further hide
            #  DMA jitter; left at the default double-buffering for portability.)
            pl.BlockSpec((TB, TD), lambda i, k: (i, k)),    # x: streamed per tile
            wf_spec,
            pl.BlockSpec((8, NF), lambda i, k: (0, 0)),     # packed logvar/logpi/musq/b1
            pl.BlockSpec((NF + 8, CP), lambda i, k: (0, 0)),  # packed w2 | b2
        ]
        out_specs = pl.BlockSpec((TB, CP), lambda i, k: (i, 0))
        scratch_shapes = [pltpu.VMEM((TB, NF), jnp.float32),    # fused-matmul accumulator
                          pltpu.VMEM((TB, 1), jnp.float32)]     # ||x||^2 accumulator
        semantics = ("parallel", "arbitrary")
        est = (2 * TB * TD * itemsize + wf_bytes + out_bytes + small_bytes
               + TB * (NF + _LANE) * 4)

    # > v5e's 16 MiB scoped default, capped below v7x's 64 MiB physical VMEM.
    vmem_limit = int(min(max(32 << 20, 2 * est), 56 << 20))

    out = pl.pallas_call(
        kernel,
        out_shape=jax.ShapeDtypeStruct((Bp, CP), f32),
        grid_spec=pltpu.PrefetchScalarGridSpec(
            num_scalar_prefetch=0,
            grid=grid,
            in_specs=in_specs,
            out_specs=out_specs,
            scratch_shapes=scratch_shapes,
        ),
        compiler_params=pltpu.CompilerParams(
            dimension_semantics=semantics,
            vmem_limit_bytes=vmem_limit),
    )(x2d, wf, small, w2b)

    return out[:B, :C]


def robust_model_reference(x_nchw, params, loglam, classes, matmul_dtype):
    """Pure-JAX reference mirroring the PyTorch forward (with the same bf16 rounding
    of x / mu / w1 when matmul_dtype is bf16)."""
    mu, logvar, logpi, w1, b1, w2, b2 = params
    f32 = jnp.float32
    B = x_nchw.shape[0]
    D = int(np.prod(x_nchw.shape[1:]))
    xr = x_nchw.reshape(B, D).astype(matmul_dtype).astype(f32)
    mur = mu.astype(matmul_dtype).astype(f32)
    w1r = w1.astype(matmul_dtype).astype(f32)
    with jax.default_matmul_precision("highest"):
        sqdist = jnp.sum((xr[:, None, :] - mur[None, :, :]) ** 2, axis=-1)   # (B, K)
        loglik = (logpi[None, :]
                  - 0.5 * D * (jnp.log(2.0 * jnp.pi) + logvar[None, :])
                  - 0.5 * sqdist * jnp.exp(-logvar[None, :]))
        like = jax.scipy.special.logsumexp(loglik, axis=-1, keepdims=True)   # (B, 1)
        h = jnp.maximum(xr @ w1r + b1[None, :].astype(f32), 0.0)
        logp = jax.nn.log_softmax(h @ w2.astype(f32) + b2[None, :].astype(f32), axis=-1)
    log_k = -jnp.log(float(classes))
    return jnp.logaddexp(logp + like, loglam + log_k) - jnp.logaddexp(like, loglam)


if __name__ == "__main__":
    key = jax.random.PRNGKey(0)
    B, Cin, Hs, Ws = 48, 4, 16, 16          # small NCHW input, D = 1024
    D = Cin * Hs * Ws
    K = 8                                   # mixture components
    Hd = 32                                 # MLP hidden width
    classes = 10

    ks = jax.random.split(key, 8)
    x = jax.random.normal(ks[0], (B, Cin, Hs, Ws), jnp.float32)
    mu = 0.5 * jax.random.normal(ks[1], (K, D), jnp.float32)
    logvar = jnp.log(1.5) + 0.05 * jax.random.normal(ks[2], (K,), jnp.float32)
    logpi = jax.nn.log_softmax(jax.random.normal(ks[3], (K,), jnp.float32))
    w1 = jax.random.normal(ks[4], (D, Hd), jnp.float32) / np.sqrt(D)
    b1 = 0.01 * jax.random.normal(ks[5], (Hd,), jnp.float32)
    w2 = jax.random.normal(ks[6], (Hd, classes), jnp.float32) / np.sqrt(Hd)
    b2 = 0.01 * jax.random.normal(ks[7], (classes,), jnp.float32)
    params = (mu, logvar, logpi, w1, b1, w2, b2)

    # loglam on the scale of the mixture log-likelihoods so BOTH branches of the CCU
    # log-add-exp are active (otherwise the check saturates at log 1/classes).
    loglam = -1577.0

    ref_f32 = robust_model_reference(x, params, loglam, classes, jnp.float32)
    ref_bf16 = robust_model_reference(x, params, loglam, classes, jnp.bfloat16)

    # 1) Default path: bf16 matmul operands, small-D fast path (no D grid axis),
    #    wf VMEM-resident, 2 batch tiles (v7x megacore split).
    out_fast = jax.block_until_ready(robust_model(x, params, loglam, classes))
    assert out_fast.shape == (B, classes)
    np.testing.assert_allclose(np.asarray(out_fast), np.asarray(ref_bf16),
                               rtol=5e-3, atol=8e-2)

    # 2) Forced tiled f32 path (3 batch tiles x 2 D tiles, wf VMEM-resident + sliced).
    out_f32 = jax.block_until_ready(
        robust_model(x, params, loglam, classes, tb=16, td=512,
                     matmul_dtype=jnp.float32, small_d_max_bytes=0))
    np.testing.assert_allclose(np.asarray(out_f32), np.asarray(ref_f32),
                               rtol=5e-3, atol=5e-2)

    # 3) Forced tiled bf16 path with wf streamed over D (the very-large-D fallback).
    out_bf = jax.block_until_ready(
        robust_model(x, params, loglam, classes, tb=16, td=512,
                     matmul_dtype=jnp.bfloat16, small_d_max_bytes=0,
                     wf_resident_max_bytes=0))
    np.testing.assert_allclose(np.asarray(out_bf), np.asarray(ref_bf16),
                               rtol=5e-3, atol=8e-2)

    print("KERNEL_OK")
</pallas_src>

<mosaic_0001>
module attributes {stable_mosaic.version = 11 : i64} {
  func.func @robust_model_kernel_fused(%arg0: i32, %arg1: memref<24x1024xbf16, #tpu.memory_space<vmem>>, %arg2: memref<1024x128xbf16, #tpu.memory_space<vmem>>, %arg3: memref<8x128xf32, #tpu.memory_space<vmem>>, %arg4: memref<136x128xf32, #tpu.memory_space<vmem>>, %arg5: memref<24x128xf32, #tpu.memory_space<vmem>>) attributes {dimension_semantics = [#tpu.dimension_semantics<parallel>], iteration_bounds = array<i64: 2>, scalar_prefetch = 0 : i64, scratch_operands = 0 : i64, tpu.core_type = #tpu.core_type<tc>, window_params = [{transform_indices = @transform_0, window_bounds = array<i64: 24, 1024>}, {pipeline_mode = #tpu.pipeline_mode<synchronous>, transform_indices = @transform_1, window_bounds = array<i64: 1024, 128>}, {pipeline_mode = #tpu.pipeline_mode<synchronous>, transform_indices = @transform_2, window_bounds = array<i64: 8, 128>}, {pipeline_mode = #tpu.pipeline_mode<synchronous>, transform_indices = @transform_3, window_bounds = array<i64: 136, 128>}, {transform_indices = @transform_4, window_bounds = array<i64: 24, 128>}]} {
    %c0 = arith.constant 0 : index
    %c0_0 = arith.constant 0 : index
    %0 = vector.load %arg1[%c0, %c0_0] : memref<24x1024xbf16, #tpu.memory_space<vmem>>, vector<24x1024xbf16>
    %c0_1 = arith.constant 0 : index
    %c0_2 = arith.constant 0 : index
    %1 = vector.load %arg2[%c0_1, %c0_2] : memref<1024x128xbf16, #tpu.memory_space<vmem>>, vector<1024x128xbf16>
    %cst = arith.constant dense<0.000000e+00> : vector<24x128xf32>
    %2 = tpu.matmul %0, %1, %cst {dimension_numbers = #tpu.dot_dimension_numbers<[1], [0], [0], [1], [0, 0, 1, 1], [], []>} : vector<24x1024xbf16>, vector<1024x128xbf16>, vector<24x128xf32> -> vector<24x128xf32>
    %3 = arith.extf %0 : vector<24x1024xbf16> to vector<24x1024xf32>
    %4 = arith.mulf %3, %3 : vector<24x1024xf32>
    %cst_3 = arith.constant dense<0.000000e+00> : vector<24xf32>
    %5 = vector.multi_reduction <add>, %4, %cst_3 [1] : vector<24x1024xf32> to vector<24xf32>
    %6 = vector.shape_cast %5 : vector<24xf32> to vector<24x1xf32>
    %c0_4 = arith.constant 0 : index
    %c0_5 = arith.constant 0 : index
    %7 = vector.load %arg3[%c0_4, %c0_5] : memref<8x128xf32, #tpu.memory_space<vmem>>, vector<1x128xf32>
    %c1 = arith.constant 1 : index
    %c0_6 = arith.constant 0 : index
    %8 = vector.load %arg3[%c1, %c0_6] : memref<8x128xf32, #tpu.memory_space<vmem>>, vector<1x128xf32>
    %c2 = arith.constant 2 : index
    %c0_7 = arith.constant 0 : index
    %9 = vector.load %arg3[%c2, %c0_7] : memref<8x128xf32, #tpu.memory_space<vmem>>, vector<1x128xf32>
    %c3 = arith.constant 3 : index
    %c0_8 = arith.constant 0 : index
    %10 = vector.load %arg3[%c3, %c0_8] : memref<8x128xf32, #tpu.memory_space<vmem>>, vector<1x128xf32>
    %cst_9 = arith.constant 0.000000e+00 : f32
    %11 = vector.broadcast %cst_9 : f32 to vector<1x128xf32>
    %12 = arith.subf %11, %7 : vector<1x128xf32>
    %13 = math.exp %12 : vector<1x128xf32>
    %14 = vector.broadcast %6 : vector<24x1xf32> to vector<24x128xf32>
    %15 = vector.broadcast %9 : vector<1x128xf32> to vector<24x128xf32>
    %16 = arith.addf %14, %15 : vector<24x128xf32>
    %cst_10 = arith.constant 2.000000e+00 : f32
    %17 = vector.broadcast %cst_10 : f32 to vector<24x128xf32>
    %18 = arith.mulf %17, %2 : vector<24x128xf32>
    %19 = arith.subf %16, %18 : vector<24x128xf32>
    %cst_11 = arith.constant 0.000000e+00 : f32
    %20 = vector.broadcast %cst_11 : f32 to vector<24x128xf32>
    %21 = arith.maximumf %19, %20 : vector<24x128xf32>
    %cst_12 = arith.constant 1.83787704 : f32
    %22 = vector.broadcast %cst_12 : f32 to vector<1x128xf32>
    %23 = arith.addf %22, %7 : vector<1x128xf32>
    %cst_13 = arith.constant 5.120000e+02 : f32
    %24 = vector.broadcast %cst_13 : f32 to vector<1x128xf32>
    %25 = arith.mulf %24, %23 : vector<1x128xf32>
    %26 = arith.subf %8, %25 : vector<1x128xf32>
    %cst_14 = arith.constant 5.000000e-01 : f32
    %27 = vector.broadcast %cst_14 : f32 to vector<24x128xf32>
    %28 = arith.mulf %27, %21 : vector<24x128xf32>
    %29 = vector.broadcast %13 : vector<1x128xf32> to vector<24x128xf32>
    %30 = arith.mulf %28, %29 : vector<24x128xf32>
    %31 = vector.broadcast %26 : vector<1x128xf32> to vector<24x128xf32>
    %32 = arith.subf %31, %30 : vector<24x128xf32>
    %cst_15 = arith.constant dense<0xFF800000> : vector<24xf32>
    %33 = vector.multi_reduction <maximumf>, %32, %cst_15 [1] : vector<24x128xf32> to vector<24xf32>
    %34 = vector.shape_cast %33 : vector<24xf32> to vector<24x1xf32>
    %35 = vector.broadcast %34 : vector<24x1xf32> to vector<24x128xf32>
    %36 = arith.subf %32, %35 : vector<24x128xf32>
    %37 = math.exp %36 : vector<24x128xf32>
    %cst_16 = arith.constant dense<0.000000e+00> : vector<24xf32>
    %38 = vector.multi_reduction <add>, %37, %cst_16 [1] : vector<24x128xf32> to vector<24xf32>
    %39 = vector.shape_cast %38 : vector<24xf32> to vector<24x1xf32>
    %40 = math.log %39 : vector<24x1xf32>
    %41 = arith.addf %34, %40 : vector<24x1xf32>
    %42 = vector.broadcast %10 : vector<1x128xf32> to vector<24x128xf32>
    %43 = arith.addf %2, %42 : vector<24x128xf32>
    %cst_17 = arith.constant 0.000000e+00 : f32
    %44 = vector.broadcast %cst_17 : f32 to vector<24x128xf32>
    %45 = arith.maximumf %43, %44 : vector<24x128xf32>
    %c0_18 = arith.constant 0 : index
    %c0_19 = arith.constant 0 : index
    %46 = vector.load %arg4[%c0_18, %c0_19] : memref<136x128xf32, #tpu.memory_space<vmem>>, vector<128x128xf32>
    %cst_20 = arith.constant dense<0.000000e+00> : vector<24x128xf32>
    %47 = tpu.matmul %45, %46, %cst_20 {dimension_numbers = #tpu.dot_dimension_numbers<[1], [0], [0], [1], [0, 0, 1, 1], [], []>} : vector<24x128xf32>, vector<128x128xf32>, vector<24x128xf32> -> vector<24x128xf32>
    %c128 = arith.constant 128 : index
    %c0_21 = arith.constant 0 : index
    %48 = vector.load %arg4[%c128, %c0_21] : memref<136x128xf32, #tpu.memory_space<vmem>>, vector<1x128xf32>
    %49 = vector.broadcast %48 : vector<1x128xf32> to vector<24x128xf32>
    %50 = arith.addf %47, %49 : vector<24x128xf32>
    %cst_22 = arith.constant dense<0xFF800000> : vector<24xf32>
    %51 = vector.multi_reduction <maximumf>, %50, %cst_22 [1] : vector<24x128xf32> to vector<24xf32>
    %52 = vector.shape_cast %51 : vector<24xf32> to vector<24x1xf32>
    %53 = vector.broadcast %52 : vector<24x1xf32> to vector<24x128xf32>
    %54 = arith.subf %50, %53 : vector<24x128xf32>
    %55 = math.exp %54 : vector<24x128xf32>
    %cst_23 = arith.constant dense<0.000000e+00> : vector<24xf32>
    %56 = vector.multi_reduction <add>, %55, %cst_23 [1] : vector<24x128xf32> to vector<24xf32>
    %57 = vector.shape_cast %56 : vector<24xf32> to vector<24x1xf32>
    %58 = math.log %57 : vector<24x1xf32>
    %59 = arith.addf %52, %58 : vector<24x1xf32>
    %60 = vector.broadcast %59 : vector<24x1xf32> to vector<24x128xf32>
    %61 = arith.subf %50, %60 : vector<24x128xf32>
    %62 = vector.broadcast %41 : vector<24x1xf32> to vector<24x128xf32>
    %63 = arith.addf %61, %62 : vector<24x128xf32>
    %cst_24 = arith.constant -1579.30261 : f32
    %64 = vector.broadcast %cst_24 : f32 to vector<24x128xf32>
    %65 = arith.maximumf %63, %64 : vector<24x128xf32>
    %66 = arith.subf %63, %65 : vector<24x128xf32>
    %67 = math.exp %66 : vector<24x128xf32>
    %cst_25 = arith.constant -1579.30261 : f32
    %68 = vector.broadcast %cst_25 : f32 to vector<24x128xf32>
    %69 = arith.subf %68, %65 : vector<24x128xf32>
    %70 = math.exp %69 : vector<24x128xf32>
    %71 = arith.addf %67, %70 : vector<24x128xf32>
    %72 = math.log %71 : vector<24x128xf32>
    %73 = arith.addf %65, %72 : vector<24x128xf32>
    %cst_26 = arith.constant -1.577000e+03 : f32
    %74 = vector.broadcast %cst_26 : f32 to vector<24x1xf32>
    %75 = arith.maximumf %41, %74 : vector<24x1xf32>
    %76 = arith.subf %41, %75 : vector<24x1xf32>
    %77 = math.exp %76 : vector<24x1xf32>
    %cst_27 = arith.constant -1.577000e+03 : f32
    %78 = vector.broadcast %cst_27 : f32 to vector<24x1xf32>
    %79 = arith.subf %78, %75 : vector<24x1xf32>
    %80 = math.exp %79 : vector<24x1xf32>
    %81 = arith.addf %77, %80 : vector<24x1xf32>
    %82 = math.log %81 : vector<24x1xf32>
    %83 = arith.addf %75, %82 : vector<24x1xf32>
    %84 = vector.broadcast %83 : vector<24x1xf32> to vector<24x128xf32>
    %85 = arith.subf %73, %84 : vector<24x128xf32>
    %c0_28 = arith.constant 0 : index
    %c0_29 = arith.constant 0 : index
    %86 = vector.load %arg5[%c0_28, %c0_29] : memref<24x128xf32, #tpu.memory_space<vmem>>, vector<24x128xf32>
    tpu.vector_store %arg5[%c0_28, %c0_29], %85 {strides = array<i32>} : memref<24x128xf32, #tpu.memory_space<vmem>>, vector<24x128xf32>,
    return
  }
  func.func @transform_0(%arg0: i32) -> (i32, i32) {
    %c0_i32 = arith.constant 0 : i32
    %c0_i32_0 = arith.constant 0 : i32
    return %arg0, %c0_i32 : i32, i32
  }
  func.func @transform_1(%arg0: i32) -> (i32, i32) {
    %c0_i32 = arith.constant 0 : i32
    %c0_i32_0 = arith.constant 0 : i32
    %c0_i32_1 = arith.constant 0 : i32
    return %c0_i32, %c0_i32_0 : i32, i32
  }
  func.func @transform_2(%arg0: i32) -> (i32, i32) {
    %c0_i32 = arith.constant 0 : i32
    %c0_i32_0 = arith.constant 0 : i32
    %c0_i32_1 = arith.constant 0 : i32
    return %c0_i32, %c0_i32_0 : i32, i32
  }
  func.func @transform_3(%arg0: i32) -> (i32, i32) {
    %c0_i32 = arith.constant 0 : i32
    %c0_i32_0 = arith.constant 0 : i32
    %c0_i32_1 = arith.constant 0 : i32
    return %c0_i32, %c0_i32_0 : i32, i32
  }
  func.func @transform_4(%arg0: i32) -> (i32, i32) {
    %c0_i32 = arith.constant 0 : i32
    %c0_i32_0 = arith.constant 0 : i32
    return %arg0, %c0_i32 : i32, i32
  }
}

</mosaic_0001>

<llo_original>
// kernel: tpu_custom_call.1
$region0: #{tpu_custom_call.1}
  #allocation0 [shape = 'u32[]', space=smem, size = 0x4, offset = 0x4, fixed_abs, tag = 'smem constant byte address 0x4 - core index']
  #allocation1 [shape = 'u32[144,128]{1,0:T(1,128)}', space=vmem, size = 0x12000, scoped, tag = 'internal scratch']
  %s0 = inlined_call_operand.hbm [shape: bf16[48,1024], index: 0, kind: input, shape index: {}]
  %s1 = inlined_call_operand.hbm [shape: bf16[1024,128], index: 1, kind: input, shape index: {}]
  %s2 = inlined_call_operand.hbm [shape: f32[8,128], index: 2, kind: input, shape index: {}]
  %s3 = inlined_call_operand.hbm [shape: f32[136,128], index: 3, kind: input, shape index: {}]
  %s4 = inlined_call_operand.hbm [shape: f32[48,128], index: 4, kind: output, shape index: {}]
  %s5 = sld [smem:[#allocation0]]
  $region65: #{tpu_custom_call.1} parent=0
    _
  %s7 = ssub.s32 1, %s5
  %s8 = scalar_select 0, %s7, %s5
  $region1: #{tpu_custom_call.1} parent=0
    #allocation2 [shape = 'u8[98304]{0}', space=vmem, size = 0x18000, scoped, tag = 'input window, operand 0']
    #allocation3 [shape = 's32[2]{0}', space=sflag, size = 0x8, scoped, tag = 'scoped memory for tpu_custom_call.1']
    #allocation4 [shape = 's32[2]{0}', space=sflag, size = 0x8, scoped, tag = 'scoped memory for tpu_custom_call.1']
    #allocation5 [shape = 'u8[262144]{0}', space=vmem, size = 0x40000, scoped, tag = 'input window, operand 1, single buffered']
    #allocation6 [shape = 's32[1]{0}', space=sflag, size = 0x4, scoped, tag = 'scoped memory for tpu_custom_call.1']
    #allocation7 [shape = 'u8[4096]{0}', space=vmem, size = 0x1000, scoped, tag = 'input window, operand 2, single buffered']
    #allocation8 [shape = 'u8[69632]{0}', space=vmem, size = 0x11000, scoped, tag = 'input window, operand 3, single buffered']
    #allocation9 [shape = 's32[1]{0}', space=sflag, size = 0x4, scoped, tag = 'scoped memory for tpu_custom_call.1']
    #allocation10 [shape = 'u8[24576]{0}', space=vmem, size = 0x6000, scoped, tag = 'output window, operand 0']
    %9 = vsyncpa [#allocation3], 0
    %s10 = scalar_lea.sflag [#allocation3], 1
    %11 = vsyncpa %s10, 0
    %12 = vsyncpa [#allocation6], 0
    %13 = vsyncpa [#allocation9], 0
    %14 = vsyncpa [#allocation4], 0
    %s15 = scalar_lea.sflag [#allocation4], 1
    %16 = vsyncpa %s15, 0
    loop: start=0, step=1, limit=4
    $region2: #{tpu_custom_call.1} parent=1 // loop_pre_header
      _
    $region3: #{tpu_custom_call.1} parent=1 // loop_header
      %s18 = sphi 0, %s22
      %p19 = scmp.ge.s32.totalorder %s18, 4
      %s28 = sphi 0, %s30
      %s31 = sphi 0, %s28
      %s32 = sphi 0, %s31
      %s48 = sphi 0, %s32
      %s52 = sphi 0, %s52
      %s54 = sphi 0, %s52
      %s55 = sphi 0, %s54
      %s69 = sphi 0, %s55
      %s73 = sphi 0, %s73
      %s75 = sphi 0, %s73
      %s76 = sphi 0, %s75
      %s90 = sphi 0, %s76
      %s94 = sphi 0, %s94
      %s96 = sphi 0, %s94
      %s97 = sphi 0, %s96
      %s111 = sphi 0, %s97
      %s117 = sphi 0, %s119
      %s120 = sphi 0, %s117
      %s121 = sphi 0, %s120
      %s137 = sphi 0, %s121
    $region4: #{tpu_custom_call.1} parent=1 // loop_header_branch
      %21 = sbr.rel (%p19) target = $region8
    $region5: #{tpu_custom_call.1} parent=1 // loop_body
      %s23 = ssub.s32 %s18, 1
      %s24 = ssub.s32 %s18, 2
      %s25 = sadd.s32 %s18, 1
      %s26 = ssub.s32 %s18, %s25
      %p27 = scmp.eq.s32.totalorder %s26, 0
      %s29 = sadd.s32 %s28, 1
      %s30 = scalar_select %p27, %s28, %s29
      %p33 = pneg %p27
      %p34 = scmp.eq.s32.totalorder %s18, 1
      %p35 = por %p33, %p34
      %p36 = scmp.ne.s32.totalorder %s28, %s31
      %p37 = scmp.eq.s32.totalorder %s18, 0
      %p38 = por %p36, %p37
      %p39 = scmp.ne.s32.totalorder %s28, %s31
      %p40 = scmp.eq.s32.totalorder %s23, 1
      %p41 = por %p39, %p40
      %p42 = scmp.ne.s32.totalorder %s31, %s32
      %p43 = scmp.eq.s32.totalorder %s23, 0
      %p44 = por %p42, %p43
      %p45 = scmp.ne.s32.totalorder %s31, %s32
      %p46 = scmp.eq.s32.totalorder %s24, 1
      %p47 = por %p45, %p46
      %p49 = scmp.ne.s32.totalorder %s32, %s48
      %p50 = scmp.eq.s32.totalorder %s24, 0
      %p51 = por %p49, %p50
      %s53 = sadd.s32 %s52, 1
      %p56 = scmp.eq.s32.totalorder %s18, 1
      %p57 = scmp.ne.s32.totalorder %s52, %s54
      %p58 = scmp.eq.s32.totalorder %s18, 0
      %p59 = por %p57, %p58
      %p60 = scmp.ne.s32.totalorder %s52, %s54
      %p61 = scmp.eq.s32.totalorder %s23, 1
      %p62 = por %p60, %p61
      %p63 = scmp.ne.s32.totalorder %s54, %s55
      %p64 = scmp.eq.s32.totalorder %s23, 0
      %p65 = por %p63, %p64
      %p66 = scmp.ne.s32.totalorder %s54, %s55
      %p67 = scmp.eq.s32.totalorder %s24, 1
      %p68 = por %p66, %p67
      %p70 = scmp.ne.s32.totalorder %s55, %s69
      %p71 = scmp.eq.s32.totalorder %s24, 0
      %p72 = por %p70, %p71
      %s74 = sadd.s32 %s73, 1
      %p77 = scmp.eq.s32.totalorder %s18, 1
      %p78 = scmp.ne.s32.totalorder %s73, %s75
      %p79 = scmp.eq.s32.totalorder %s18, 0
      %p80 = por %p78, %p79
      %p81 = scmp.ne.s32.totalorder %s73, %s75
      %p82 = scmp.eq.s32.totalorder %s23, 1
      %p83 = por %p81, %p82
      %p84 = scmp.ne.s32.totalorder %s75, %s76
      %p85 = scmp.eq.s32.totalorder %s23, 0
      %p86 = por %p84, %p85
      %p87 = scmp.ne.s32.totalorder %s75, %s76
      %p88 = scmp.eq.s32.totalorder %s24, 1
      %p89 = por %p87, %p88
      %p91 = scmp.ne.s32.totalorder %s76, %s90
      %p92 = scmp.eq.s32.totalorder %s24, 0
      %p93 = por %p91, %p92
      %s95 = sadd.s32 %s94, 1
      %p98 = scmp.eq.s32.totalorder %s18, 1
      %p99 = scmp.ne.s32.totalorder %s94, %s96
      %p100 = scmp.eq.s32.totalorder %s18, 0
      %p101 = por %p99, %p100
      %p102 = scmp.ne.s32.totalorder %s94, %s96
      %p103 = scmp.eq.s32.totalorder %s23, 1
      %p104 = por %p102, %p103
      %p105 = scmp.ne.s32.totalorder %s96, %s97
      %p106 = scmp.eq.s32.totalorder %s23, 0
      %p107 = por %p105, %p106
      %p108 = scmp.ne.s32.totalorder %s96, %s97
      %p109 = scmp.eq.s32.totalorder %s24, 1
      %p110 = por %p108, %p109
      %p112 = scmp.ne.s32.totalorder %s97, %s111
      %p113 = scmp.eq.s32.totalorder %s24, 0
      %p114 = por %p112, %p113
      %s115 = ssub.s32 %s18, %s25
      %p116 = scmp.eq.s32.totalorder %s115, 0
      %s118 = sadd.s32 %s117, 1
      %s119 = scalar_select %p116, %s117, %s118
      %p122 = pneg %p116
      %p123 = scmp.eq.s32.totalorder %s18, 1
      %p124 = por %p122, %p123
      %p125 = scmp.ne.s32.totalorder %s117, %s120
      %p126 = scmp.eq.s32.totalorder %s18, 0
      %p127 = por %p125, %p126
      %p128 = scmp.ne.s32.totalorder %s117, %s120
      %p129 = scmp.eq.s32.totalorder %s23, 1
      %p130 = por %p128, %p129
      %p131 = scmp.ne.s32.totalorder %s120, %s121
      %p132 = scmp.eq.s32.totalorder %s23, 0
      %p133 = por %p131, %p132
      %p134 = scmp.ne.s32.totalorder %s120, %s121
      %p135 = scmp.eq.s32.totalorder %s24, 1
      %p136 = por %p134, %p135
      %p138 = scmp.ne.s32.totalorder %s121, %s137
      %p139 = scmp.eq.s32.totalorder %s24, 0
      %p140 = por %p138, %p139
      %p141 = scmp.le.s32.totalorder 1, %s18
      %p142 = scmp.lt.s32.totalorder %s18, 3
      %p143 = pnand %p141, %p142
      %p144 = pneg %p143
      // Predicated region
      $region9: #{tpu_custom_call.1} parent=5 // pred_check
        _
      $region10: #{tpu_custom_call.1} parent=5 // pred_check_branch
        %146 = sbr.rel (%p143) target = $region12
      $region11: #{tpu_custom_call.1} parent=5 // pred_region
        %s147 = ssub.s32 %s18, 1
        // Predicated region
        $region13: #{tpu_custom_call.1} parent=11 // pred_check
          %p148 = pneg %p65
        $region14: #{tpu_custom_call.1} parent=11 // pred_check_branch
          %150 = sbr.rel (%p148) target = $region16
        $region15: #{tpu_custom_call.1} parent=11 // pred_region
          %s152 = ssub.s32 8192, 8192
          %153 = vsyncadd [#allocation6], %s152
          %s154 = sshll.u32 [#allocation5], 4
          %s155 = int_to_ptr.vmem [resolvable:$true] %s154
          %160 = dma.hbm_to_vmem [thread:$0]  %s1, 8192, %s155, [#allocation6], 64, 64, 4
        $region16: #{tpu_custom_call.1} parent=11 // pred_fallthru
          _
        // Predicated region
        $region17: #{tpu_custom_call.1} parent=11 // pred_check
          %p161 = pneg %p86
        $region18: #{tpu_custom_call.1} parent=11 // pred_check_branch
          %163 = sbr.rel (%p161) target = $region20
        $region19: #{tpu_custom_call.1} parent=11 // pred_region
          %s165 = ssub.s32 128, 128
          %166 = vsyncadd [#allocation6], %s165
          %s168 = sshll.u32 [#allocation7], 4
          %s169 = int_to_ptr.vmem [resolvable:$true] %s168
          %171 = dma.hbm_to_vmem [thread:$0]  %s2, 128, %s169, [#allocation6]
        $region20: #{tpu_custom_call.1} parent=11 // pred_fallthru
          _
        // Predicated region
        $region21: #{tpu_custom_call.1} parent=11 // pred_check
          %p172 = pneg %p107
        $region22: #{tpu_custom_call.1} parent=11 // pred_check_branch
          %174 = sbr.rel (%p172) target = $region24
        $region23: #{tpu_custom_call.1} parent=11 // pred_region
          %s176 = ssub.s32 2176, 2176
          %177 = vsyncadd [#allocation9], %s176
          %s178 = sshll.u32 [#allocation8], 4
          %s179 = int_to_ptr.vmem [resolvable:$true] %s178
          %184 = dma.hbm_to_vmem [thread:$0]  %s3, 2176, %s179, [#allocation9], 128, 128, 8
        $region24: #{tpu_custom_call.1} parent=11 // pred_fallthru
          _
      $region12: #{tpu_custom_call.1} parent=5 // pred_fallthru
        _
      %p185 = scmp.lt.s32.totalorder %s18, 2
      // Predicated region
      $region25: #{tpu_custom_call.1} parent=5 // pred_check
        %p186 = pneg %p185
      $region26: #{tpu_custom_call.1} parent=5 // pred_check_branch
        %188 = sbr.rel (%p186) target = $region28
      $region27: #{tpu_custom_call.1} parent=5 // pred_region
        // Predicated region
        $region29: #{tpu_custom_call.1} parent=27 // pred_check
          %p189 = pneg %p38
        $region30: #{tpu_custom_call.1} parent=27 // pred_check_branch
          %191 = sbr.rel (%p189) target = $region32
        $region31: #{tpu_custom_call.1} parent=27 // pred_region
          %s192 = sand.u32 %s28, 1
          %s193 = scalar_lea.sflag [#allocation3], %s192
          %s194 = sand.u32 %s28, 1
          %s195 = smul.addr %s194, 96
          %s196 = scalar_lea.vmem [#allocation2], %s195
          %s197 = smul.u32 3, %s18
          %s199 = ssub.s32 1536, 1536
          %200 = vsyncadd %s193, %s199
          %s201 = smul.addr %s197, 8
          %s202 = smul.addr %s201, 64
          %s203 = scalar_lea.hbm %s0, %s202
          %s204 = sshll.u32 %s196, 4
          %s205 = int_to_ptr.vmem [resolvable:$true] %s204
          %210 = dma.hbm_to_vmem [thread:$0]  %s203, 1536, %s205, %s193, 512, 512, 32
        $region32: #{tpu_custom_call.1} parent=27 // pred_fallthru
          _
      $region28: #{tpu_custom_call.1} parent=5 // pred_fallthru
        _
      %p211 = scmp.le.s32.totalorder 1, %s18
      %p212 = scmp.lt.s32.totalorder %s18, 3
      %p213 = pnand %p211, %p212
      %p214 = pneg %p213
      // Predicated region
      $region33: #{tpu_custom_call.1} parent=5 // pred_check
        _
      $region34: #{tpu_custom_call.1} parent=5 // pred_check_branch
        %216 = sbr.rel (%p213) target = $region36
      $region35: #{tpu_custom_call.1} parent=5 // pred_region
        %s217 = ssub.s32 %s18, 1
        %s218 = sand.u32 %s31, 1
        %s219 = scalar_lea.sflag [#allocation3], %s218
        %s220 = sand.u32 %s31, 1
        %s221 = smul.addr %s220, 96
        %s222 = scalar_lea.vmem [#allocation2], %s221
        // Predicated region
        $region37: #{tpu_custom_call.1} parent=35 // pred_check
          %p223 = pneg %p44
        $region38: #{tpu_custom_call.1} parent=35 // pred_check_branch
          %225 = sbr.rel (%p223) target = $region40
        $region39: #{tpu_custom_call.1} parent=35 // pred_region
          %226 = dma.done %s219, 1536
        $region40: #{tpu_custom_call.1} parent=35 // pred_fallthru
          _
        // Predicated region
        $region41: #{tpu_custom_call.1} parent=35 // pred_check
          %p227 = pneg %p65
        $region42: #{tpu_custom_call.1} parent=35 // pred_check_branch
          %229 = sbr.rel (%p227) target = $region44
        $region43: #{tpu_custom_call.1} parent=35 // pred_region
          %230 = dma.done [#allocation6], 8192
        $region44: #{tpu_custom_call.1} parent=35 // pred_fallthru
          _
        // Predicated region
        $region45: #{tpu_custom_call.1} parent=35 // pred_check
          %p231 = pneg %p86
        $region46: #{tpu_custom_call.1} parent=35 // pred_check_branch
          %233 = sbr.rel (%p231) target = $region48
        $region47: #{tpu_custom_call.1} parent=35 // pred_region
          %234 = dma.done [#allocation6], 128
        $region48: #{tpu_custom_call.1} parent=35 // pred_fallthru
          _
        // Predicated region
        $region49: #{tpu_custom_call.1} parent=35 // pred_check
          %p235 = pneg %p107
        $region50: #{tpu_custom_call.1} parent=35 // pred_check_branch
          %237 = sbr.rel (%p235) target = $region52
        $region51: #{tpu_custom_call.1} parent=35 // pred_region
          %238 = dma.done [#allocation9], 2176
        $region52: #{tpu_custom_call.1} parent=35 // pred_fallthru
          _
        %s239 = sand.u32 %s31, 1
        %s240 = scalar_lea.sflag [#allocation3], %s239
        %s241 = sand.u32 %s31, 1
        %s242 = smul.addr %s241, 96
        %s243 = scalar_lea.vmem [#allocation2], %s242
        %p244 = pneg %p44
        %p245 = pneg %p41
        %p246 = pneg %p65
        %p247 = pneg %p62
        %p248 = pneg %p86
        %p249 = pneg %p83
        %p250 = pneg %p107
        %p251 = pneg %p104
        %p252 = pneg %p133
        %p253 = pneg %p130
        %s254 = sand.u32 %s120, 1
        %s255 = scalar_lea.sflag [#allocation4], %s254
        %s256 = sand.u32 %s120, 1
        %s257 = smul.addr %s256, 24
        %s258 = scalar_lea.vmem [#allocation10], %s257
        %s259 = smul.u32 3, %s23
        %s260 = smul.u32 3, %s23
        %v262 = vld [vmem:[%s222] sm:$0xff]
        %v263 = vld [vmem:[%s222 + $0x8] sm:$0xff]
        %v264 = vld [vmem:[%s222 + $0x10] sm:$0xff]
        %v265 = vld [vmem:[%s222 + $0x18] sm:$0xff]
        %v266 = vld [vmem:[%s222 + $0x20] sm:$0xff]
        %v267 = vld [vmem:[%s222 + $0x28] sm:$0xff]
        %v268 = vld [vmem:[%s222 + $0x30] sm:$0xff]
        %v269 = vld [vmem:[%s222 + $0x38] sm:$0xff]
        %v270 = vld [vmem:[%s222 + $0x40] sm:$0xff]
        %v271 = vld [vmem:[%s222 + $0x48] sm:$0xff]
        %v272 = vld [vmem:[%s222 + $0x50] sm:$0xff]
        %v273 = vld [vmem:[%s222 + $0x58] sm:$0xff]
        %v274 = vld [vmem:[#allocation5] sm:$0xf]
        %v275 = vld [vmem:[#allocation5 + $0x4] sm:$0xf]
        %v276 = vld [vmem:[#allocation5 + $0x8] sm:$0xf]
        %v277 = vld [vmem:[#allocation5 + $0xc] sm:$0xf]
        %v278 = vld [vmem:[#allocation5 + $0x10] sm:$0xf]
        %v279 = vld [vmem:[#allocation5 + $0x14] sm:$0xf]
        %v280 = vld [vmem:[#allocation5 + $0x18] sm:$0xf]
        %v281 = vld [vmem:[#allocation5 + $0x1c] sm:$0xf]
        %v282 = vld [vmem:[#allocation5 + $0x20] sm:$0xf]
        %v283 = vld [vmem:[#allocation5 + $0x24] sm:$0xf]
        %v284 = vld [vmem:[#allocation5 + $0x28] sm:$0xf]
        %v285 = vld [vmem:[#allocation5 + $0x2c] sm:$0xf]
        %v286 = vld [vmem:[#allocation5 + $0x30] sm:$0xf]
        %v287 = vld [vmem:[#allocation5 + $0x34] sm:$0xf]
        %v288 = vld [vmem:[#allocation5 + $0x38] sm:$0xf]
        %v289 = vld [vmem:[#allocation5 + $0x3c] sm:$0xf]
        %v290 = vld [vmem:[#allocation5 + $0x40] sm:$0xf]
        %v291 = vld [vmem:[#allocation5 + $0x44] sm:$0xf]
        %v292 = vld [vmem:[#allocation5 + $0x48] sm:$0xf]
        %v293 = vld [vmem:[#allocation5 + $0x4c] sm:$0xf]
        %v294 = vld [vmem:[#allocation5 + $0x50] sm:$0xf]
        %v295 = vld [vmem:[#allocation5 + $0x54] sm:$0xf]
        %v296 = vld [vmem:[#allocation5 + $0x58] sm:$0xf]
        %v297 = vld [vmem:[#allocation5 + $0x5c] sm:$0xf]
        %v298 = vld [vmem:[#allocation5 + $0x60] sm:$0xf]
        %v299 = vld [vmem:[#allocation5 + $0x64] sm:$0xf]
        %v300 = vld [vmem:[#allocation5 + $0x68] sm:$0xf]
        %v301 = vld [vmem:[#allocation5 + $0x6c] sm:$0xf]
        %v302 = vld [vmem:[#allocation5 + $0x70] sm:$0xf]
        %v303 = vld [vmem:[#allocation5 + $0x74] sm:$0xf]
        %v304 = vld [vmem:[#allocation5 + $0x78] sm:$0xf]
        %v305 = vld [vmem:[#allocation5 + $0x7c] sm:$0xf]
        %v306 = vld [vmem:[#allocation5 + $0x80] sm:$0xf]
        %v307 = vld [vmem:[#allocation5 + $0x84] sm:$0xf]
        %v308 = vld [vmem:[#allocation5 + $0x88] sm:$0xf]
        %v309 = vld [vmem:[#allocation5 + $0x8c] sm:$0xf]
        %v310 = vld [vmem:[#allocation5 + $0x90] sm:$0xf]
        %v311 = vld [vmem:[#allocation5 + $0x94] sm:$0xf]
        %v312 = vld [vmem:[#allocation5 + $0x98] sm:$0xf]
        %v313 = vld [vmem:[#allocation5 + $0x9c] sm:$0xf]
        %v314 = vld [vmem:[#allocation5 + $0xa0] sm:$0xf]
        %v315 = vld [vmem:[#allocation5 + $0xa4] sm:$0xf]
        %v316 = vld [vmem:[#allocation5 + $0xa8] sm:$0xf]
        %v317 = vld [vmem:[#allocation5 + $0xac] sm:$0xf]
        %v318 = vld [vmem:[#allocation5 + $0xb0] sm:$0xf]
        %v319 = vld [vmem:[#allocation5 + $0xb4] sm:$0xf]
        %v320 = vld [vmem:[#allocation5 + $0xb8] sm:$0xf]
        %v321 = vld [vmem:[#allocation5 + $0xbc] sm:$0xf]
        %v322 = vld [vmem:[#allocation5 + $0xc0] sm:$0xf]
        %v323 = vld [vmem:[#allocation5 + $0xc4] sm:$0xf]
        %v324 = vld [vmem:[#allocation5 + $0xc8] sm:$0xf]
        %v325 = vld [vmem:[#allocation5 + $0xcc] sm:$0xf]
        %v326 = vld [vmem:[#allocation5 + $0xd0] sm:$0xf]
        %v327 = vld [vmem:[#allocation5 + $0xd4] sm:$0xf]
        %v328 = vld [vmem:[#allocation5 + $0xd8] sm:$0xf]
        %v329 = vld [vmem:[#allocation5 + $0xdc] sm:$0xf]
        %v330 = vld [vmem:[#allocation5 + $0xe0] sm:$0xf]
        %v331 = vld [vmem:[#allocation5 + $0xe4] sm:$0xf]
        %v332 = vld [vmem:[#allocation5 + $0xe8] sm:$0xf]
        %v333 = vld [vmem:[#allocation5 + $0xec] sm:$0xf]
        %v334 = vld [vmem:[#allocation5 + $0xf0] sm:$0xf]
        %v335 = vld [vmem:[#allocation5 + $0xf4] sm:$0xf]
        %v336 = vld [vmem:[#allocation5 + $0xf8] sm:$0xf]
        %v337 = vld [vmem:[#allocation5 + $0xfc] sm:$0xf]
        %v338 = vld [vmem:[#allocation5 + $0x100] sm:$0xf]
        %v339 = vld [vmem:[#allocation5 + $0x104] sm:$0xf]
        %v340 = vld [vmem:[#allocation5 + $0x108] sm:$0xf]
        %v341 = vld [vmem:[#allocation5 + $0x10c] sm:$0xf]
        %v342 = vld [vmem:[#allocation5 + $0x110] sm:$0xf]
        %v343 = vld [vmem:[#allocation5 + $0x114] sm:$0xf]
        %v344 = vld [vmem:[#allocation5 + $0x118] sm:$0xf]
        %v345 = vld [vmem:[#allocation5 + $0x11c] sm:$0xf]
        %v346 = vld [vmem:[#allocation5 + $0x120] sm:$0xf]
        %v347 = vld [vmem:[#allocation5 + $0x124] sm:$0xf]
        %v348 = vld [vmem:[#allocation5 + $0x128] sm:$0xf]
        %v349 = vld [vmem:[#allocation5 + $0x12c] sm:$0xf]
        %v350 = vld [vmem:[#allocation5 + $0x130] sm:$0xf]
        %v351 = vld [vmem:[#allocation5 + $0x134] sm:$0xf]
        %v352 = vld [vmem:[#allocation5 + $0x138] sm:$0xf]
        %v353 = vld [vmem:[#allocation5 + $0x13c] sm:$0xf]
        %v354 = vld [vmem:[#allocation5 + $0x140] sm:$0xf]
        %v355 = vld [vmem:[#allocation5 + $0x144] sm:$0xf]
        %v356 = vld [vmem:[#allocation5 + $0x148] sm:$0xf]
        %v357 = vld [vmem:[#allocation5 + $0x14c] sm:$0xf]
        %v358 = vld [vmem:[#allocation5 + $0x150] sm:$0xf]
        %v359 = vld [vmem:[#allocation5 + $0x154] sm:$0xf]
        %v360 = vld [vmem:[#allocation5 + $0x158] sm:$0xf]
        %v361 = vld [vmem:[#allocation5 + $0x15c] sm:$0xf]
        %v362 = vld [vmem:[#allocation5 + $0x160] sm:$0xf]
        %v363 = vld [vmem:[#allocation5 + $0x164] sm:$0xf]
        %v364 = vld [vmem:[#allocation5 + $0x168] sm:$0xf]
        %v365 = vld [vmem:[#allocation5 + $0x16c] sm:$0xf]
        %v366 = vld [vmem:[#allocation5 + $0x170] sm:$0xf]
        %v367 = vld [vmem:[#allocation5 + $0x174] sm:$0xf]
        %v368 = vld [vmem:[#allocation5 + $0x178] sm:$0xf]
        %v369 = vld [vmem:[#allocation5 + $0x17c] sm:$0xf]
        %v370 = vld [vmem:[#allocation5 + $0x180] sm:$0xf]
        %v371 = vld [vmem:[#allocation5 + $0x184] sm:$0xf]
        %v372 = vld [vmem:[#allocation5 + $0x188] sm:$0xf]
        %v373 = vld [vmem:[#allocation5 + $0x18c] sm:$0xf]
        %v374 = vld [vmem:[#allocation5 + $0x190] sm:$0xf]
        %v375 = vld [vmem:[#allocation5 + $0x194] sm:$0xf]
        %v376 = vld [vmem:[#allocation5 + $0x198] sm:$0xf]
        %v377 = vld [vmem:[#allocation5 + $0x19c] sm:$0xf]
        %v378 = vld [vmem:[#allocation5 + $0x1a0] sm:$0xf]
        %v379 = vld [vmem:[#allocation5 + $0x1a4] sm:$0xf]
        %v380 = vld [vmem:[#allocation5 + $0x1a8] sm:$0xf]
        %v381 = vld [vmem:[#allocation5 + $0x1ac] sm:$0xf]
        %v382 = vld [vmem:[#allocation5 + $0x1b0] sm:$0xf]
        %v383 = vld [vmem:[#allocation5 + $0x1b4] sm:$0xf]
        %v384 = vld [vmem:[#allocation5 + $0x1b8] sm:$0xf]
        %v385 = vld [vmem:[#allocation5 + $0x1bc] sm:$0xf]
        %v386 = vld [vmem:[#allocation5 + $0x1c0] sm:$0xf]
        %v387 = vld [vmem:[#allocation5 + $0x1c4] sm:$0xf]
        %v388 = vld [vmem:[#allocation5 + $0x1c8] sm:$0xf]
        %v389 = vld [vmem:[#allocation5 + $0x1cc] sm:$0xf]
        %v390 = vld [vmem:[#allocation5 + $0x1d0] sm:$0xf]
        %v391 = vld [vmem:[#allocation5 + $0x1d4] sm:$0xf]
        %v392 = vld [vmem:[#allocation5 + $0x1d8] sm:$0xf]
        %v393 = vld [vmem:[#allocation5 + $0x1dc] sm:$0xf]
        %v394 = vld [vmem:[#allocation5 + $0x1e0] sm:$0xf]
        %v395 = vld [vmem:[#allocation5 + $0x1e4] sm:$0xf]
        %v396 = vld [vmem:[#allocation5 + $0x1e8] sm:$0xf]
        %v397 = vld [vmem:[#allocation5 + $0x1ec] sm:$0xf]
        %v398 = vld [vmem:[#allocation5 + $0x1f0] sm:$0xf]
        %v399 = vld [vmem:[#allocation5 + $0x1f4] sm:$0xf]
        %v400 = vld [vmem:[#allocation5 + $0x1f8] sm:$0xf]
        %v401 = vld [vmem:[#allocation5 + $0x1fc] sm:$0xf]
        %v414 = vunpack.c.l.b16 %v262
        %v415 = vunpack.c.h.b16 %v262
        %v416 = vunpack.c.l.b16 %v263
        %v417 = vunpack.c.h.b16 %v263
        %v418 = vunpack.c.l.b16 %v264
        %v419 = vunpack.c.h.b16 %v264
        %v420 = vunpack.c.l.b16 %v265
        %v421 = vunpack.c.h.b16 %v265
        %v422 = vunpack.c.l.b16 %v266
        %v423 = vunpack.c.h.b16 %v266
        %v424 = vunpack.c.l.b16 %v267
        %v425 = vunpack.c.h.b16 %v267
        %v426 = vunpack.c.l.b16 %v268
        %v427 = vunpack.c.h.b16 %v268
        %v428 = vunpack.c.l.b16 %v269
        %v429 = vunpack.c.h.b16 %v269
        %v430 = vunpack.c.l.b16 %v270
        %v431 = vunpack.c.h.b16 %v270
        %v432 = vunpack.c.l.b16 %v271
        %v433 = vunpack.c.h.b16 %v271
        %v434 = vunpack.c.l.b16 %v272
        %v435 = vunpack.c.h.b16 %v272
        %v436 = vunpack.c.l.b16 %v273
        %v437 = vunpack.c.h.b16 %v273
        %v438 = vpack.c.b16 %v422, %v414
        %v439 = vpack.c.b16 %v423, %v415
        %v440 = vpack.c.b16 %v424, %v416
        %v441 = vpack.c.b16 %v425, %v417
        %v442 = vpack.c.b16 %v426, %v418
        %v443 = vpack.c.b16 %v427, %v419
        %v444 = vpack.c.b16 %v428, %v420
        %v445 = vpack.c.b16 %v429, %v421
        %v446 = vpack.c.b16 %v430, %v430
        %v447 = vpack.c.b16 %v431, %v431
        %v448 = vpack.c.b16 %v432, %v432
        %v449 = vpack.c.b16 %v433, %v433
        %v450 = vpack.c.b16 %v434, %v434
        %v451 = vpack.c.b16 %v435, %v435
        %v452 = vpack.c.b16 %v436, %v436
        %v453 = vpack.c.b16 %v437, %v437
        %v598 = vunpack.c.l.b16 %v274
        %v599 = vunpack.c.l.b16 %v275
        %v600 = vunpack.c.l.b16 %v276
        %v601 = vunpack.c.l.b16 %v277
        %v602 = vunpack.c.l.b16 %v278
        %v603 = vunpack.c.l.b16 %v279
        %v604 = vunpack.c.l.b16 %v280
        %v605 = vunpack.c.l.b16 %v281
        %v606 = vunpack.c.l.b16 %v282
        %v607 = vunpack.c.l.b16 %v283
        %v608 = vunpack.c.l.b16 %v284
        %v609 = vunpack.c.l.b16 %v285
        %v610 = vunpack.c.l.b16 %v286
        %v611 = vunpack.c.l.b16 %v287
        %v612 = vunpack.c.l.b16 %v288
        %v613 = vunpack.c.l.b16 %v289
        %v614 = vunpack.c.l.b16 %v290
        %v615 = vunpack.c.l.b16 %v291
        %v616 = vunpack.c.l.b16 %v292
        %v617 = vunpack.c.l.b16 %v293
        %v618 = vunpack.c.l.b16 %v294
        %v619 = vunpack.c.l.b16 %v295
        %v620 = vunpack.c.l.b16 %v296
        %v621 = vunpack.c.l.b16 %v297
        %v622 = vunpack.c.l.b16 %v298
        %v623 = vunpack.c.l.b16 %v299
        %v624 = vunpack.c.l.b16 %v300
        %v625 = vunpack.c.l.b16 %v301
        %v626 = vunpack.c.l.b16 %v302
        %v627 = vunpack.c.l.b16 %v303
        %v628 = vunpack.c.l.b16 %v304
        %v629 = vunpack.c.l.b16 %v305
        %v630 = vunpack.c.l.b16 %v306
        %v631 = vunpack.c.l.b16 %v307
        %v632 = vunpack.c.l.b16 %v308
        %v633 = vunpack.c.l.b16 %v309
        %v634 = vunpack.c.l.b16 %v310
        %v635 = vunpack.c.l.b16 %v311
        %v636 = vunpack.c.l.b16 %v312
        %v637 = vunpack.c.l.b16 %v313
        %v638 = vunpack.c.l.b16 %v314
        %v639 = vunpack.c.l.b16 %v315
        %v640 = vunpack.c.l.b16 %v316
        %v641 = vunpack.c.l.b16 %v317
        %v642 = vunpack.c.l.b16 %v318
        %v643 = vunpack.c.l.b16 %v319
        %v644 = vunpack.c.l.b16 %v320
        %v645 = vunpack.c.l.b16 %v321
        %v646 = vunpack.c.l.b16 %v322
        %v647 = vunpack.c.l.b16 %v323
        %v648 = vunpack.c.l.b16 %v324
        %v649 = vunpack.c.l.b16 %v325
        %v650 = vunpack.c.l.b16 %v326
        %v651 = vunpack.c.l.b16 %v327
        %v652 = vunpack.c.l.b16 %v328
        %v653 = vunpack.c.l.b16 %v329
        %v654 = vunpack.c.l.b16 %v330
        %v655 = vunpack.c.l.b16 %v331
        %v656 = vunpack.c.l.b16 %v332
        %v657 = vunpack.c.l.b16 %v333
        %v658 = vunpack.c.l.b16 %v334
        %v659 = vunpack.c.l.b16 %v335
        %v660 = vunpack.c.l.b16 %v336
        %v661 = vunpack.c.l.b16 %v337
        %v662 = vunpack.c.l.b16 %v338
        %v663 = vunpack.c.l.b16 %v339
        %v664 = vunpack.c.l.b16 %v340
        %v665 = vunpack.c.l.b16 %v341
        %v666 = vunpack.c.l.b16 %v342
        %v667 = vunpack.c.l.b16 %v343
        %v668 = vunpack.c.l.b16 %v344
        %v669 = vunpack.c.l.b16 %v345
        %v670 = vunpack.c.l.b16 %v346
        %v671 = vunpack.c.l.b16 %v347
        %v672 = vunpack.c.l.b16 %v348
        %v673 = vunpack.c.l.b16 %v349
        %v674 = vunpack.c.l.b16 %v350
        %v675 = vunpack.c.l.b16 %v351
        %v676 = vunpack.c.l.b16 %v352
        %v677 = vunpack.c.l.b16 %v353
        %v678 = vunpack.c.l.b16 %v354
        %v679 = vunpack.c.l.b16 %v355
        %v680 = vunpack.c.l.b16 %v356
        %v681 = vunpack.c.l.b16 %v357
        %v682 = vunpack.c.l.b16 %v358
        %v683 = vunpack.c.l.b16 %v359
        %v684 = vunpack.c.l.b16 %v360
        %v685 = vunpack.c.l.b16 %v361
        %v686 = vunpack.c.l.b16 %v362
        %v687 = vunpack.c.l.b16 %v363
        %v688 = vunpack.c.l.b16 %v364
        %v689 = vunpack.c.l.b16 %v365
        %v690 = vunpack.c.l.b16 %v366
        %v691 = vunpack.c.l.b16 %v367
        %v692 = vunpack.c.l.b16 %v368
        %v693 = vunpack.c.l.b16 %v369
        %v694 = vunpack.c.l.b16 %v370
        %v695 = vunpack.c.l.b16 %v371
        %v696 = vunpack.c.l.b16 %v372
        %v697 = vunpack.c.l.b16 %v373
        %v698 = vunpack.c.l.b16 %v374
        %v699 = vunpack.c.l.b16 %v375
        %v700 = vunpack.c.l.b16 %v376
        %v701 = vunpack.c.l.b16 %v377
        %v702 = vunpack.c.l.b16 %v378
        %v703 = vunpack.c.l.b16 %v379
        %v704 = vunpack.c.l.b16 %v380
        %v705 = vunpack.c.l.b16 %v381
        %v706 = vunpack.c.l.b16 %v382
        %v707 = vunpack.c.l.b16 %v383
        %v708 = vunpack.c.l.b16 %v384
        %v709 = vunpack.c.l.b16 %v385
        %v710 = vunpack.c.l.b16 %v386
        %v711 = vunpack.c.l.b16 %v387
        %v712 = vunpack.c.l.b16 %v388
        %v713 = vunpack.c.l.b16 %v389
        %v714 = vunpack.c.l.b16 %v390
        %v715 = vunpack.c.l.b16 %v391
        %v716 = vunpack.c.l.b16 %v392
        %v717 = vunpack.c.l.b16 %v393
        %v718 = vunpack.c.l.b16 %v394
        %v719 = vunpack.c.l.b16 %v395
        %v720 = vunpack.c.l.b16 %v396
        %v721 = vunpack.c.l.b16 %v397
        %v722 = vunpack.c.l.b16 %v398
        %v723 = vunpack.c.l.b16 %v399
        %v724 = vunpack.c.l.b16 %v400
        %v725 = vunpack.c.l.b16 %v401
        %v726 = vpack.c.b16 %v599, %v598
        %v727 = vpack.c.b16 %v601, %v600
        %v728 = vpack.c.b16 %v603, %v602
        %v729 = vpack.c.b16 %v605, %v604
        %v730 = vpack.c.b16 %v607, %v606
        %v731 = vpack.c.b16 %v609, %v608
        %v732 = vpack.c.b16 %v611, %v610
        %v733 = vpack.c.b16 %v613, %v612
        %v734 = vpack.c.b16 %v615, %v614
        %v735 = vpack.c.b16 %v617, %v616
        %v736 = vpack.c.b16 %v619, %v618
        %v737 = vpack.c.b16 %v621, %v620
        %v738 = vpack.c.b16 %v623, %v622
        %v739 = vpack.c.b16 %v625, %v624
        %v740 = vpack.c.b16 %v627, %v626
        %v741 = vpack.c.b16 %v629, %v628
        %v742 = vpack.c.b16 %v631, %v630
        %v743 = vpack.c.b16 %v633, %v632
        %v744 = vpack.c.b16 %v635, %v634
        %v745 = vpack.c.b16 %v637, %v636
        %v746 = vpack.c.b16 %v639, %v638
        %v747 = vpack.c.b16 %v641, %v640
        %v748 = vpack.c.b16 %v643, %v642
        %v749 = vpack.c.b16 %v645, %v644
        %v750 = vpack.c.b16 %v647, %v646
        %v751 = vpack.c.b16 %v649, %v648
        %v752 = vpack.c.b16 %v651, %v650
        %v753 = vpack.c.b16 %v653, %v652
        %v754 = vpack.c.b16 %v655, %v654
        %v755 = vpack.c.b16 %v657, %v656
        %v756 = vpack.c.b16 %v659, %v658
        %v757 = vpack.c.b16 %v661, %v660
        %v758 = vpack.c.b16 %v663, %v662
        %v759 = vpack.c.b16 %v665, %v664
        %v760 = vpack.c.b16 %v667, %v666
        %v761 = vpack.c.b16 %v669, %v668
        %v762 = vpack.c.b16 %v671, %v670
        %v763 = vpack.c.b16 %v673, %v672
        %v764 = vpack.c.b16 %v675, %v674
        %v765 = vpack.c.b16 %v677, %v676
        %v766 = vpack.c.b16 %v679, %v678
        %v767 = vpack.c.b16 %v681, %v680
        %v768 = vpack.c.b16 %v683, %v682
        %v769 = vpack.c.b16 %v685, %v684
        %v770 = vpack.c.b16 %v687, %v686
        %v771 = vpack.c.b16 %v689, %v688
        %v772 = vpack.c.b16 %v691, %v690
        %v773 = vpack.c.b16 %v693, %v692
        %v774 = vpack.c.b16 %v695, %v694
        %v775 = vpack.c.b16 %v697, %v696
        %v776 = vpack.c.b16 %v699, %v698
        %v777 = vpack.c.b16 %v701, %v700
        %v778 = vpack.c.b16 %v703, %v702
        %v779 = vpack.c.b16 %v705, %v704
        %v780 = vpack.c.b16 %v707, %v706
        %v781 = vpack.c.b16 %v709, %v708
        %v782 = vpack.c.b16 %v711, %v710
        %v783 = vpack.c.b16 %v713, %v712
        %v784 = vpack.c.b16 %v715, %v714
        %v785 = vpack.c.b16 %v717, %v716
        %v786 = vpack.c.b16 %v719, %v718
        %v787 = vpack.c.b16 %v721, %v720
        %v788 = vpack.c.b16 %v723, %v722
        %v789 = vpack.c.b16 %v725, %v724
        %854 = vmatprep.subr.bf16.mxu0 0
        %855 = vmatpush1.bf16.msra.mxu0 %v726
        %856 = vmatprep.subr.bf16.mxu0 0
        %857 = vmatpush1.bf16.msra.mxu0 %v727
        %858 = vmatprep.subr.bf16.mxu0 0
        %859 = vmatpush1.bf16.msra.mxu0 %v728
        %860 = vmatprep.subr.bf16.mxu0 0
        %861 = vmatpush1.bf16.msra.mxu0 %v729
        %862 = vmatprep.subr.bf16.mxu0 0
        %863 = vmatpush1.bf16.msra.mxu0 %v730
        %864 = vmatprep.subr.bf16.mxu0 0
        %865 = vmatpush1.bf16.msra.mxu0 %v731
        %866 = vmatprep.subr.bf16.mxu0 0
        %867 = vmatpush1.bf16.msra.mxu0 %v732
        %868 = vmatprep.subr.bf16.mxu0 0
        %869 = vmatpush1.bf16.msra.mxu0 %v733
        %870 = vmatprep.subr.bf16.mxu0 0
        %871 = vmatpush1.bf16.msra.mxu0 %v734
        %872 = vmatprep.subr.bf16.mxu0 0
        %873 = vmatpush1.bf16.msra.mxu0 %v735
        %874 = vmatprep.subr.bf16.mxu0 0
        %875 = vmatpush1.bf16.msra.mxu0 %v736
        %876 = vmatprep.subr.bf16.mxu0 0
        %877 = vmatpush1.bf16.msra.mxu0 %v737
        %878 = vmatprep.subr.bf16.mxu0 0
        %879 = vmatpush1.bf16.msra.mxu0 %v738
        %880 = vmatprep.subr.bf16.mxu0 0
        %881 = vmatpush1.bf16.msra.mxu0 %v739
        %882 = vmatprep.subr.bf16.mxu0 0
        %883 = vmatpush1.bf16.msra.mxu0 %v740
        %884 = vmatprep.subr.bf16.mxu0 0
        %885 = vmatpush1.bf16.msra.mxu0 %v741
        %886 = vmatprep.mubr.bf16.mxu0 %v439
        %887 = vmatmul.mubr.bf16.gmra.mrb[0].mxu0 %v438
        %v888 = vpop.f32.mrb[0].mxu0
        %v889 = vadd.f32 0.0, %v888
        %v890 = vpop.f32.mrb[0].mxu0
        %v891 = vpop.f32.mrb[0].mxu0
        %v892 = vadd.f32 0.0, %v891
        %v893 = vpop.f32.mrb[0].mxu0
        %894 = vmatprep.mubr.bf16.mxu0 %v447
        %895 = vmatmul.mubr.bf16.gmra.mrb[0].mxu0 %v446
        %v896 = vpop.f32.mrb[0].mxu0
        %v897 = vadd.f32 0.0, %v896
        %v898 = vpop.f32.mrb[0].mxu0
        %v899 = vpop.f32.mrb[0].mxu0
        %v900 = vpop.f32.mrb[0].mxu0
        %901 = vdwg.mxu0
        %902 = vmatprep.subr.bf16.mxu0 0
        %903 = vmatpush1.bf16.msra.mxu0 %v742
        %904 = vmatprep.subr.bf16.mxu0 0
        %905 = vmatpush1.bf16.msra.mxu0 %v743
        %906 = vmatprep.subr.bf16.mxu0 0
        %907 = vmatpush1.bf16.msra.mxu0 %v744
        %908 = vmatprep.subr.bf16.mxu0 0
        %909 = vmatpush1.bf16.msra.mxu0 %v745
        %910 = vmatprep.subr.bf16.mxu0 0
        %911 = vmatpush1.bf16.msra.mxu0 %v746
        %912 = vmatprep.subr.bf16.mxu0 0
        %913 = vmatpush1.bf16.msra.mxu0 %v747
        %914 = vmatprep.subr.bf16.mxu0 0
        %915 = vmatpush1.bf16.msra.mxu0 %v748
        %916 = vmatprep.subr.bf16.mxu0 0
        %917 = vmatpush1.bf16.msra.mxu0 %v749
        %918 = vmatprep.subr.bf16.mxu0 0
        %919 = vmatpush1.bf16.msra.mxu0 %v750
        %920 = vmatprep.subr.bf16.mxu0 0
        %921 = vmatpush1.bf16.msra.mxu0 %v751
        %922 = vmatprep.subr.bf16.mxu0 0
        %923 = vmatpush1.bf16.msra.mxu0 %v752
        %924 = vmatprep.subr.bf16.mxu0 0
        %925 = vmatpush1.bf16.msra.mxu0 %v753
        %926 = vmatprep.subr.bf16.mxu0 0
        %927 = vmatpush1.bf16.msra.mxu0 %v754
        %928 = vmatprep.subr.bf16.mxu0 0
        %929 = vmatpush1.bf16.msra.mxu0 %v755
        %930 = vmatprep.subr.bf16.mxu0 0
        %931 = vmatpush1.bf16.msra.mxu0 %v756
        %932 = vmatprep.subr.bf16.mxu0 0
        %933 = vmatpush1.bf16.msra.mxu0 %v757
        %934 = vmatprep.mubr.bf16.mxu0 %v441
        %935 = vmatmul.mubr.bf16.gmra.mrb[0].mxu0 %v440
        %v936 = vpop.f32.mrb[0].mxu0
        %v937 = vadd.f32 %v889, %v936
        %v938 = vpop.f32.mrb[0].mxu0
        %v939 = vpop.f32.mrb[0].mxu0
        %v940 = vadd.f32 %v892, %v939
        %v941 = vpop.f32.mrb[0].mxu0
        %942 = vmatprep.mubr.bf16.mxu0 %v449
        %943 = vmatmul.mubr.bf16.gmra.mrb[0].mxu0 %v448
        %v944 = vpop.f32.mrb[0].mxu0
        %v945 = vadd.f32 %v897, %v944
        %v946 = vpop.f32.mrb[0].mxu0
        %v947 = vpop.f32.mrb[0].mxu0
        %v948 = vpop.f32.mrb[0].mxu0
        %949 = vdwg.mxu0
        %950 = vmatprep.subr.bf16.mxu0 0
        %951 = vmatpush1.bf16.msra.mxu0 %v758
        %952 = vmatprep.subr.bf16.mxu0 0
        %953 = vmatpush1.bf16.msra.mxu0 %v759
        %954 = vmatprep.subr.bf16.mxu0 0
        %955 = vmatpush1.bf16.msra.mxu0 %v760
        %956 = vmatprep.subr.bf16.mxu0 0
        %957 = vmatpush1.bf16.msra.mxu0 %v761
        %958 = vmatprep.subr.bf16.mxu0 0
        %959 = vmatpush1.bf16.msra.mxu0 %v762
        %960 = vmatprep.subr.bf16.mxu0 0
        %961 = vmatpush1.bf16.msra.mxu0 %v763
        %962 = vmatprep.subr.bf16.mxu0 0
        %963 = vmatpush1.bf16.msra.mxu0 %v764
        %964 = vmatprep.subr.bf16.mxu0 0
        %965 = vmatpush1.bf16.msra.mxu0 %v765
        %966 = vmatprep.subr.bf16.mxu0 0
        %967 = vmatpush1.bf16.msra.mxu0 %v766
        %968 = vmatprep.subr.bf16.mxu0 0
        %969 = vmatpush1.bf16.msra.mxu0 %v767
        %970 = vmatprep.subr.bf16.mxu0 0
        %971 = vmatpush1.bf16.msra.mxu0 %v768
        %972 = vmatprep.subr.bf16.mxu0 0
        %973 = vmatpush1.bf16.msra.mxu0 %v769
        %974 = vmatprep.subr.bf16.mxu0 0
        %975 = vmatpush1.bf16.msra.mxu0 %v770
        %976 = vmatprep.subr.bf16.mxu0 0
        %977 = vmatpush1.bf16.msra.mxu0 %v771
        %978 = vmatprep.subr.bf16.mxu0 0
        %979 = vmatpush1.bf16.msra.mxu0 %v772
        %980 = vmatprep.subr.bf16.mxu0 0
        %981 = vmatpush1.bf16.msra.mxu0 %v773
        %982 = vmatprep.mubr.bf16.mxu0 %v443
        %983 = vmatmul.mubr.bf16.gmra.mrb[0].mxu0 %v442
        %v984 = vpop.f32.mrb[0].mxu0
        %v985 = vadd.f32 %v937, %v984
        %v986 = vpop.f32.mrb[0].mxu0
        %v987 = vpop.f32.mrb[0].mxu0
        %v988 = vadd.f32 %v940, %v987
        %v989 = vpop.f32.mrb[0].mxu0
        %990 = vmatprep.mubr.bf16.mxu0 %v451
        %991 = vmatmul.mubr.bf16.gmra.mrb[0].mxu0 %v450
        %v992 = vpop.f32.mrb[0].mxu0
        %v993 = vadd.f32 %v945, %v992
        %v994 = vpop.f32.mrb[0].mxu0
        %v995 = vpop.f32.mrb[0].mxu0
        %v996 = vpop.f32.mrb[0].mxu0
        %997 = vdwg.mxu0
        %998 = vmatprep.subr.bf16.mxu0 0
        %999 = vmatpush1.bf16.msra.mxu0 %v774
        %1000 = vmatprep.subr.bf16.mxu0 0
        %1001 = vmatpush1.bf16.msra.mxu0 %v775
        %1002 = vmatprep.subr.bf16.mxu0 0
        %1003 = vmatpush1.bf16.msra.mxu0 %v776
        %1004 = vmatprep.subr.bf16.mxu0 0
        %1005 = vmatpush1.bf16.msra.mxu0 %v777
        %1006 = vmatprep.subr.bf16.mxu0 0
        %1007 = vmatpush1.bf16.msra.mxu0 %v778
        %1008 = vmatprep.subr.bf16.mxu0 0
        %1009 = vmatpush1.bf16.msra.mxu0 %v779
        %1010 = vmatprep.subr.bf16.mxu0 0
        %1011 = vmatpush1.bf16.msra.mxu0 %v780
        %1012 = vmatprep.subr.bf16.mxu0 0
        %1013 = vmatpush1.bf16.msra.mxu0 %v781
        %1014 = vmatprep.subr.bf16.mxu0 0
        %1015 = vmatpush1.bf16.msra.mxu0 %v782
        %1016 = vmatprep.subr.bf16.mxu0 0
        %1017 = vmatpush1.bf16.msra.mxu0 %v783
        %1018 = vmatprep.subr.bf16.mxu0 0
        %1019 = vmatpush1.bf16.msra.mxu0 %v784
        %1020 = vmatprep.subr.bf16.mxu0 0
        %1021 = vmatpush1.bf16.msra.mxu0 %v785
        %1022 = vmatprep.subr.bf16.mxu0 0
        %1023 = vmatpush1.bf16.msra.mxu0 %v786
        %1024 = vmatprep.subr.bf16.mxu0 0
        %1025 = vmatpush1.bf16.msra.mxu0 %v787
        %1026 = vmatprep.subr.bf16.mxu0 0
        %1027 = vmatpush1.bf16.msra.mxu0 %v788
        %1028 = vmatprep.subr.bf16.mxu0 0
        %1029 = vmatpush1.bf16.msra.mxu0 %v789
        %1030 = vmatprep.mubr.bf16.mxu0 %v445
        %1031 = vmatmul.mubr.bf16.gmra.mrb[0].mxu0 %v444
        %v1032 = vpop.f32.mrb[0].mxu0
        %v1033 = vadd.f32 %v985, %v1032
        %v1034 = vpop.f32.mrb[0].mxu0
        %v1035 = vpop.f32.mrb[0].mxu0
        %v1036 = vadd.f32 %v988, %v1035
        %v1037 = vpop.f32.mrb[0].mxu0
        %1038 = vmatprep.mubr.bf16.mxu0 %v453
        %1039 = vmatmul.mubr.bf16.gmra.mrb[0].mxu0 %v452
        %v1040 = vpop.f32.mrb[0].mxu0
        %v1041 = vadd.f32 %v993, %v1040
        %v1042 = vpop.f32.mrb[0].mxu0
        %v1043 = vpop.f32.mrb[0].mxu0
        %v1044 = vpop.f32.mrb[0].mxu0
        %1045 = vdwg.mxu0
        %v1046 = vunpack.c.l.bf16 %v262
        %v1047 = vunpack.c.h.bf16 %v262
        %v1048 = vunpack.c.l.bf16 %v263
        %v1049 = vunpack.c.h.bf16 %v263
        %v1050 = vunpack.c.l.bf16 %v264
        %v1051 = vunpack.c.h.bf16 %v264
        %v1052 = vunpack.c.l.bf16 %v265
        %v1053 = vunpack.c.h.bf16 %v265
        %v1054 = vunpack.c.l.bf16 %v266
        %v1055 = vunpack.c.h.bf16 %v266
        %v1056 = vunpack.c.l.bf16 %v267
        %v1057 = vunpack.c.h.bf16 %v267
        %v1058 = vunpack.c.l.bf16 %v268
        %v1059 = vunpack.c.h.bf16 %v268
        %v1060 = vunpack.c.l.bf16 %v269
        %v1061 = vunpack.c.h.bf16 %v269
        %v1062 = vunpack.c.l.bf16 %v270
        %v1063 = vunpack.c.h.bf16 %v270
        %v1064 = vunpack.c.l.bf16 %v271
        %v1065 = vunpack.c.h.bf16 %v271
        %v1066 = vunpack.c.l.bf16 %v272
        %v1067 = vunpack.c.h.bf16 %v272
        %v1068 = vunpack.c.l.bf16 %v273
        %v1069 = vunpack.c.h.bf16 %v273
        %v1070 = vmul.f32 %v1046, %v1046
        %v1071 = vmul.f32 %v1047, %v1047
        %v1072 = vmul.f32 %v1048, %v1048
        %v1073 = vmul.f32 %v1049, %v1049
        %v1074 = vmul.f32 %v1050, %v1050
        %v1075 = vmul.f32 %v1051, %v1051
        %v1076 = vmul.f32 %v1052, %v1052
        %v1077 = vmul.f32 %v1053, %v1053
        %v1078 = vmul.f32 %v1054, %v1054
        %v1079 = vmul.f32 %v1055, %v1055
        %v1080 = vmul.f32 %v1056, %v1056
        %v1081 = vmul.f32 %v1057, %v1057
        %v1082 = vmul.f32 %v1058, %v1058
        %v1083 = vmul.f32 %v1059, %v1059
        %v1084 = vmul.f32 %v1060, %v1060
        %v1085 = vmul.f32 %v1061, %v1061
        %v1086 = vmul.f32 %v1062, %v1062
        %v1087 = vmul.f32 %v1063, %v1063
        %v1088 = vmul.f32 %v1064, %v1064
        %v1089 = vmul.f32 %v1065, %v1065
        %v1090 = vmul.f32 %v1066, %v1066
        %v1091 = vmul.f32 %v1067, %v1067
        %v1092 = vmul.f32 %v1068, %v1068
        %v1093 = vmul.f32 %v1069, %v1069
        %v1094 = vadd.f32 %v1070, %v1071
        %v1095 = vadd.f32 %v1094, %v1072
        %v1096 = vadd.f32 %v1095, %v1073
        %v1097 = vadd.f32 %v1096, %v1074
        %v1098 = vadd.f32 %v1097, %v1075
        %v1099 = vadd.f32 %v1098, %v1076
        %v1100 = vadd.f32 %v1099, %v1077
        %1101 = vadd.xlane.f32.xlu0 %v1100
        %v1102 = vpop.xlane.xlu0 %1101
        %v1103 = vadd.f32 %v1078, %v1079
        %v1104 = vadd.f32 %v1103, %v1080
        %v1105 = vadd.f32 %v1104, %v1081
        %v1106 = vadd.f32 %v1105, %v1082
        %v1107 = vadd.f32 %v1106, %v1083
        %v1108 = vadd.f32 %v1107, %v1084
        %v1109 = vadd.f32 %v1108, %v1085
        %1110 = vadd.xlane.f32.xlu0 %v1109
        %v1111 = vpop.xlane.xlu0 %1110
        %v1112 = vadd.f32 %v1086, %v1087
        %v1113 = vadd.f32 %v1112, %v1088
        %v1114 = vadd.f32 %v1113, %v1089
        %v1115 = vadd.f32 %v1114, %v1090
        %v1116 = vadd.f32 %v1115, %v1091
        %v1117 = vadd.f32 %v1116, %v1092
        %v1118 = vadd.f32 %v1117, %v1093
        %1119 = vadd.xlane.f32.xlu0 %v1118
        %v1120 = vpop.xlane.xlu0 %1119
        %v1121 = vld [vmem:[#allocation7] sm:$0x1]
        %v1122 = vld [vmem:[#allocation7 + $0x1] sm:$0x1]
        %v1123 = vld [vmem:[#allocation7 + $0x2] sm:$0x1]
        %v1124 = vld [vmem:[#allocation7 + $0x3] sm:$0x1]
        %v1125 = vsub.f32 0.0, %v1121
        %v1126 = vmul.f32 %v1125, 1.442695
        %v1127 = vpow.pop %v1126
        %v1128 = vlaneseq
        %v1129 = vshrl.u32 %v1128, 7
        %v1130 = vsub.s32 0, %v1129
        %v1131 = vrot.slane %v1123, %v1130
        %v1132 = vadd.f32 %v1102, %v1131
        %v1133 = vadd.f32 %v1111, %v1131
        %v1134 = vadd.f32 %v1120, %v1131
        %v1135 = vmul.f32 %v1033, 2.0
        %v1136 = vmul.f32 %v1036, 2.0
        %v1137 = vmul.f32 %v1041, 2.0
        %v1138 = vsub.f32 %v1132, %v1135
        %v1139 = vsub.f32 %v1133, %v1136
        %v1140 = vsub.f32 %v1134, %v1137
        %v1141 = vmax.f32 %v1138, 0.0
        %v1142 = vmax.f32 %v1139, 0.0
        %v1143 = vmax.f32 %v1140, 0.0
        %v1144 = vadd.f32 %v1121, 1.837877
        %v1145 = vmul.f32 %v1144, 512.0
        %v1146 = vsub.f32 %v1122, %v1145
        %v1147 = vmul.f32 %v1141, 0.5
        %v1148 = vmul.f32 %v1142, 0.5
        %v1149 = vmul.f32 %v1143, 0.5
        %v1150 = vlaneseq
        %v1151 = vshrl.u32 %v1150, 7
        %v1152 = vsub.s32 0, %v1151
        %v1153 = vrot.slane %v1127, %v1152
        %v1154 = vmul.f32 %v1147, %v1153
        %v1155 = vmul.f32 %v1148, %v1153
        %v1156 = vmul.f32 %v1149, %v1153
        %v1157 = vlaneseq
        %v1158 = vshrl.u32 %v1157, 7
        %v1159 = vsub.s32 0, %v1158
        %v1160 = vrot.slane %v1146, %v1159
        %v1161 = vsub.f32 %v1160, %v1154
        %v1162 = vsub.f32 %v1160, %v1155
        %v1163 = vsub.f32 %v1160, %v1156
        %1164 = vmax.xlane.f32.xlu0 %v1161
        %v1165 = vpop.xlane.xlu0 %1164
        %1166 = vmax.xlane.f32.xlu0 %v1162
        %v1167 = vpop.xlane.xlu0 %1166
        %1168 = vmax.xlane.f32.xlu0 %v1163
        %v1169 = vpop.xlane.xlu0 %1168
        %v1170 = vsub.f32 %v1161, %v1165
        %v1171 = vsub.f32 %v1162, %v1167
        %v1172 = vsub.f32 %v1163, %v1169
        %v1173 = vmul.f32 %v1170, 1.442695
        %v1174 = vpow.pop %v1173
        %v1175 = vmul.f32 %v1171, 1.442695
        %v1176 = vpow.pop %v1175
        %v1177 = vmul.f32 %v1172, 1.442695
        %v1178 = vpow.pop %v1177
        %1179 = vadd.xlane.f32.xlu0 %v1174
        %v1180 = vpop.xlane.xlu0 %1179
        %1181 = vadd.xlane.f32.xlu0 %v1176
        %v1182 = vpop.xlane.xlu0 %1181
        %1183 = vadd.xlane.f32.xlu0 %v1178
        %v1184 = vpop.xlane.xlu0 %1183
        %v1185 = vlog2.pop %v1180
        %v1186 = vmul.f32 %v1185, 0.6931472
        %v1187 = vlog2.pop %v1182
        %v1188 = vmul.f32 %v1187, 0.6931472
        %v1189 = vlog2.pop %v1184
        %v1190 = vmul.f32 %v1189, 0.6931472
        %v1191 = vadd.f32 %v1165, %v1186
        %v1192 = vadd.f32 %v1167, %v1188
        %v1193 = vadd.f32 %v1169, %v1190
        %v1194 = vlaneseq
        %v1195 = vshrl.u32 %v1194, 7
        %v1196 = vsub.s32 0, %v1195
        %v1197 = vrot.slane %v1124, %v1196
        %v1198 = vadd.f32 %v1033, %v1197
        %v1199 = vadd.f32 %v1036, %v1197
        %v1200 = vadd.f32 %v1041, %v1197
        %v1201 = vmax.f32 %v1198, 0.0
        %v1202 = vmax.f32 %v1199, 0.0
        %v1203 = vmax.f32 %v1200, 0.0
        %v1204 = vld [vmem:[#allocation8] sm:$0xff]
        %v1205 = vld [vmem:[#allocation8 + $0x8] sm:$0xff]
        %v1206 = vld [vmem:[#allocation8 + $0x10] sm:$0xff]
        %v1207 = vld [vmem:[#allocation8 + $0x18] sm:$0xff]
        %v1208 = vld [vmem:[#allocation8 + $0x20] sm:$0xff]
        %v1209 = vld [vmem:[#allocation8 + $0x28] sm:$0xff]
        %v1210 = vld [vmem:[#allocation8 + $0x30] sm:$0xff]
        %v1211 = vld [vmem:[#allocation8 + $0x38] sm:$0xff]
        %v1212 = vld [vmem:[#allocation8 + $0x40] sm:$0xff]
        %v1213 = vld [vmem:[#allocation8 + $0x48] sm:$0xff]
        %v1214 = vld [vmem:[#allocation8 + $0x50] sm:$0xff]
        %v1215 = vld [vmem:[#allocation8 + $0x58] sm:$0xff]
        %v1216 = vld [vmem:[#allocation8 + $0x60] sm:$0xff]
        %v1217 = vld [vmem:[#allocation8 + $0x68] sm:$0xff]
        %v1218 = vld [vmem:[#allocation8 + $0x70] sm:$0xff]
        %v1219 = vld [vmem:[#allocation8 + $0x78] sm:$0xff]
        %v1220 = vld [vmem:[#allocation8 + $0x80] sm:$0x1]
        %v1221 = vlaneseq
        %v1222 = vshrl.u32 %v1221, 7
        %v1223 = vsub.s32 0, %v1222
        %v1224 = vrot.slane %v1220, %v1223
        %1225 = vmatprep.subr.mxu0 0.0
        %1226 = vmatpush1.msra.mxu0 %v1204
        %1227 = vmatprep.subr.mxu0 0.0
        %1228 = vmatpush1.msra.mxu0 %v1205
        %1229 = vmatprep.subr.mxu0 0.0
        %1230 = vmatpush1.msra.mxu0 %v1206
        %1231 = vmatprep.subr.mxu0 0.0
        %1232 = vmatpush1.msra.mxu0 %v1207
        %1233 = vmatprep.subr.mxu0 0.0
        %1234 = vmatpush1.msra.mxu0 %v1208
        %1235 = vmatprep.subr.mxu0 0.0
        %1236 = vmatpush1.msra.mxu0 %v1209
        %1237 = vmatprep.subr.mxu0 0.0
        %1238 = vmatpush1.msra.mxu0 %v1210
        %1239 = vmatprep.subr.mxu0 0.0
        %1240 = vmatpush1.msra.mxu0 %v1211
        %1241 = vmatprep.subr.mxu0 0.0
        %1242 = vmatpush1.msra.mxu0 %v1212
        %1243 = vmatprep.subr.mxu0 0.0
        %1244 = vmatpush1.msra.mxu0 %v1213
        %1245 = vmatprep.subr.mxu0 0.0
        %1246 = vmatpush1.msra.mxu0 %v1214
        %1247 = vmatprep.subr.mxu0 0.0
        %1248 = vmatpush1.msra.mxu0 %v1215
        %1249 = vmatprep.subr.mxu0 0.0
        %1250 = vmatpush1.msra.mxu0 %v1216
        %1251 = vmatprep.subr.mxu0 0.0
        %1252 = vmatpush1.msra.mxu0 %v1217
        %1253 = vmatprep.subr.mxu0 0.0
        %1254 = vmatpush1.msra.mxu0 %v1218
        %1255 = vmatprep.subr.mxu0 0.0
        %1256 = vmatpush1.msra.mxu0 %v1219
        %1257 = vmatprep.subr.mxu0 0.0
        %1258 = vmatpush1.msra.mxu0 0.0
        %1259 = vmatprep.subr.mxu0 0.0
        %1260 = vmatpush1.msra.mxu0 0.0
        %1261 = vmatprep.subr.mxu0 0.0
        %1262 = vmatpush1.msra.mxu0 0.0
        %1263 = vmatprep.subr.mxu0 0.0
        %1264 = vmatpush1.msra.mxu0 0.0
        %1265 = vmatprep.subr.mxu0 0.0
        %1266 = vmatpush1.msra.mxu0 0.0
        %1267 = vmatprep.subr.mxu0 0.0
        %1268 = vmatpush1.msra.mxu0 0.0
        %1269 = vmatprep.subr.mxu0 0.0
        %1270 = vmatpush1.msra.mxu0 0.0
        %1271 = vmatprep.subr.mxu0 0.0
        %1272 = vmatpush1.msra.mxu0 0.0
        %1273 = vmatprep.subr.mxu0 0.0
        %1274 = vmatpush1.msra.mxu0 0.0
        %1275 = vmatprep.subr.mxu0 0.0
        %1276 = vmatpush1.msra.mxu0 0.0
        %1277 = vmatprep.subr.mxu0 0.0
        %1278 = vmatpush1.msra.mxu0 0.0
        %1279 = vmatprep.subr.mxu0 0.0
        %1280 = vmatpush1.msra.mxu0 0.0
        %1281 = vmatprep.subr.mxu0 0.0
        %1282 = vmatpush1.msra.mxu0 0.0
        %1283 = vmatprep.subr.mxu0 0.0
        %1284 = vmatpush1.msra.mxu0 0.0
        %1285 = vmatprep.subr.mxu0 0.0
        %1286 = vmatpush1.msra.mxu0 0.0
        %1287 = vmatprep.subr.mxu0 0.0
        %1288 = vmatpush1.msra.mxu0 0.0
        %1289 = vmatprep.mubr.f32.mxu0 0.0
        %1290 = vmatmul.mubr.f32.gmra.mrb[0].mxu0 %v1201
        %v1291 = vpop.f32.mrb[0].mxu0
        %v1292 = vadd.f32 %v1224, %v1291
        %v1293 = vpop.f32.mrb[0].mxu0
        %1294 = vmatprep.mubr.f32.mxu0 0.0
        %1295 = vmatmul.mubr.f32.gmra.mrb[0].mxu0 %v1202
        %v1296 = vpop.f32.mrb[0].mxu0
        %v1297 = vadd.f32 %v1224, %v1296
        %v1298 = vpop.f32.mrb[0].mxu0
        %1299 = vmatprep.mubr.f32.mxu0 0.0
        %1300 = vmatmul.mubr.f32.gmra.mrb[0].mxu0 %v1203
        %v1301 = vpop.f32.mrb[0].mxu0
        %v1302 = vadd.f32 %v1224, %v1301
        %v1303 = vpop.f32.mrb[0].mxu0
        %1304 = vdwg.mxu0
        %1305 = vmax.xlane.f32.xlu0 %v1292
        %v1306 = vpop.xlane.xlu0 %1305
        %1307 = vmax.xlane.f32.xlu0 %v1297
        %v1308 = vpop.xlane.xlu0 %1307
        %1309 = vmax.xlane.f32.xlu0 %v1302
        %v1310 = vpop.xlane.xlu0 %1309
        %v1311 = vsub.f32 %v1292, %v1306
        %v1312 = vsub.f32 %v1297, %v1308
        %v1313 = vsub.f32 %v1302, %v1310
        %v1314 = vmul.f32 %v1311, 1.442695
        %v1315 = vpow.pop %v1314
        %v1316 = vmul.f32 %v1312, 1.442695
        %v1317 = vpow.pop %v1316
        %v1318 = vmul.f32 %v1313, 1.442695
        %v1319 = vpow.pop %v1318
        %1320 = vadd.xlane.f32.xlu0 %v1315
        %v1321 = vpop.xlane.xlu0 %1320
        %1322 = vadd.xlane.f32.xlu0 %v1317
        %v1323 = vpop.xlane.xlu0 %1322
        %1324 = vadd.xlane.f32.xlu0 %v1319
        %v1325 = vpop.xlane.xlu0 %1324
        %v1326 = vlog2.pop %v1321
        %v1327 = vmul.f32 %v1326, 0.6931472
        %v1328 = vlog2.pop %v1323
        %v1329 = vmul.f32 %v1328, 0.6931472
        %v1330 = vlog2.pop %v1325
        %v1331 = vmul.f32 %v1330, 0.6931472
        %v1332 = vadd.f32 %v1306, %v1327
        %v1333 = vadd.f32 %v1308, %v1329
        %v1334 = vadd.f32 %v1310, %v1331
        %v1335 = vsub.f32 %v1292, %v1332
        %v1336 = vsub.f32 %v1297, %v1333
        %v1337 = vsub.f32 %v1302, %v1334
        %v1338 = vadd.f32 %v1335, %v1191
        %v1339 = vadd.f32 %v1336, %v1192
        %v1340 = vadd.f32 %v1337, %v1193
        %v1341 = vmax.f32 %v1338, -1579.3026
        %v1342 = vmax.f32 %v1339, -1579.3026
        %v1343 = vmax.f32 %v1340, -1579.3026
        %v1344 = vsub.f32 %v1338, %v1341
        %v1345 = vsub.f32 %v1339, %v1342
        %v1346 = vsub.f32 %v1340, %v1343
        %v1347 = vmul.f32 %v1344, 1.442695
        %v1348 = vpow.pop %v1347
        %v1349 = vmul.f32 %v1345, 1.442695
        %v1350 = vpow.pop %v1349
        %v1351 = vmul.f32 %v1346, 1.442695
        %v1352 = vpow.pop %v1351
        %v1353 = vsub.f32 -1579.3026, %v1341
        %v1354 = vsub.f32 -1579.3026, %v1342
        %v1355 = vsub.f32 -1579.3026, %v1343
        %v1356 = vmul.f32 %v1353, 1.442695
        %v1357 = vpow.pop %v1356
        %v1358 = vmul.f32 %v1354, 1.442695
        %v1359 = vpow.pop %v1358
        %v1360 = vmul.f32 %v1355, 1.442695
        %v1361 = vpow.pop %v1360
        %v1362 = vadd.f32 %v1348, %v1357
        %v1363 = vadd.f32 %v1350, %v1359
        %v1364 = vadd.f32 %v1352, %v1361
        %v1365 = vlog2.pop %v1362
        %v1366 = vmul.f32 %v1365, 0.6931472
        %v1367 = vlog2.pop %v1363
        %v1368 = vmul.f32 %v1367, 0.6931472
        %v1369 = vlog2.pop %v1364
        %v1370 = vmul.f32 %v1369, 0.6931472
        %v1371 = vadd.f32 %v1341, %v1366
        %v1372 = vadd.f32 %v1342, %v1368
        %v1373 = vadd.f32 %v1343, %v1370
        %v1374 = vmax.f32 %v1191, -1577.0
        %v1375 = vmax.f32 %v1192, -1577.0
        %v1376 = vmax.f32 %v1193, -1577.0
        %v1377 = vsub.f32 %v1191, %v1374
        %v1378 = vsub.f32 %v1192, %v1375
        %v1379 = vsub.f32 %v1193, %v1376
        %v1380 = vmul.f32 %v1377, 1.442695
        %v1381 = vpow.pop %v1380
        %v1382 = vmul.f32 %v1378, 1.442695
        %v1383 = vpow.pop %v1382
        %v1384 = vmul.f32 %v1379, 1.442695
        %v1385 = vpow.pop %v1384
        %v1386 = vsub.f32 -1577.0, %v1374
        %v1387 = vsub.f32 -1577.0, %v1375
        %v1388 = vsub.f32 -1577.0, %v1376
        %v1389 = vmul.f32 %v1386, 1.442695
        %v1390 = vpow.pop %v1389
        %v1391 = vmul.f32 %v1387, 1.442695
        %v1392 = vpow.pop %v1391
        %v1393 = vmul.f32 %v1388, 1.442695
        %v1394 = vpow.pop %v1393
        %v1395 = vadd.f32 %v1381, %v1390
        %v1396 = vadd.f32 %v1383, %v1392
        %v1397 = vadd.f32 %v1385, %v1394
        %v1398 = vlog2.pop %v1395
        %v1399 = vmul.f32 %v1398, 0.6931472
        %v1400 = vlog2.pop %v1396
        %v1401 = vmul.f32 %v1400, 0.6931472
        %v1402 = vlog2.pop %v1397
        %v1403 = vmul.f32 %v1402, 0.6931472
        %v1404 = vadd.f32 %v1374, %v1399
        %v1405 = vadd.f32 %v1375, %v1401
        %v1406 = vadd.f32 %v1376, %v1403
        %v1407 = vsub.f32 %v1371, %v1404
        %v1408 = vsub.f32 %v1372, %v1405
        %v1409 = vsub.f32 %v1373, %v1406
        %1410 = vst [vmem:[%s258] sm:$0xff] %v1407
        %1411 = vst [vmem:[%s258 + $0x8] sm:$0xff] %v1408
        %1412 = vst [vmem:[%s258 + $0x10] sm:$0xff] %v1409
        %s1413 = sand.u32 %s120, 1
        %s1414 = scalar_lea.sflag [#allocation4], %s1413
        %s1415 = sand.u32 %s120, 1
        %s1416 = smul.addr %s1415, 24
        %s1417 = scalar_lea.vmem [#allocation10], %s1416
        // Predicated region
        $region53: #{tpu_custom_call.1} parent=35 // pred_check
          %p1418 = pneg %p130
        $region54: #{tpu_custom_call.1} parent=35 // pred_check_branch
          %1420 = sbr.rel (%p1418) target = $region56
        $region55: #{tpu_custom_call.1} parent=35 // pred_region
          %s1421 = smul.u32 3, %s23
          %s1423 = ssub.s32 384, 384
          %1424 = vsyncadd %s1414, %s1423
          %s1425 = smul.addr %s1421, 128
          %s1426 = scalar_lea.hbm %s4, %s1425
          %s1427 = sshll.u32 %s1417, 4
          %s1428 = int_to_ptr.vmem [resolvable:$true] %s1427
          %1433 = dma.vmem_to_hbm [thread:$0]  %s1428, 384, %s1426, %s1414, 128, 128, 8
        $region56: #{tpu_custom_call.1} parent=35 // pred_fallthru
          _
      $region36: #{tpu_custom_call.1} parent=5 // pred_fallthru
        _
      %p1434 = scmp.le.s32.totalorder 2, %s18
      // Predicated region
      $region57: #{tpu_custom_call.1} parent=5 // pred_check
        %p1435 = pneg %p1434
      $region58: #{tpu_custom_call.1} parent=5 // pred_check_branch
        %1437 = sbr.rel (%p1435) target = $region60
      $region59: #{tpu_custom_call.1} parent=5 // pred_region
        %s1438 = ssub.s32 %s18, 2
        // Predicated region
        $region61: #{tpu_custom_call.1} parent=59 // pred_check
          %p1439 = pneg %p136
        $region62: #{tpu_custom_call.1} parent=59 // pred_check_branch
          %1441 = sbr.rel (%p1439) target = $region64
        $region63: #{tpu_custom_call.1} parent=59 // pred_region
          %s1442 = sand.u32 %s121, 1
          %s1443 = scalar_lea.sflag [#allocation4], %s1442
          %s1444 = sand.u32 %s121, 1
          %s1445 = smul.addr %s1444, 24
          %s1446 = scalar_lea.vmem [#allocation10], %s1445
          %1447 = dma.done %s1443, 384
        $region64: #{tpu_custom_call.1} parent=59 // pred_fallthru
          _
      $region60: #{tpu_custom_call.1} parent=5 // pred_fallthru
        _
    $region6: #{tpu_custom_call.1} parent=1 // loop_footer
      %s22 = sadd.s32 1, %s18
    $region7: #{tpu_custom_call.1} parent=1 // loop_footer_branch
      %17 = sbr.rel target = $region3
    $region8: #{tpu_custom_call.1} parent=1 // loop_exit
      _
    %1448 = vsyncpa [#allocation3], 1
    %s1449 = scalar_lea.sflag [#allocation3], 1
    %1450 = vsyncpa %s1449, 1
    %1451 = vsyncpa [#allocation6], 1
    %1452 = vsyncpa [#allocation9], 1
    %1453 = vsyncpa [#allocation4], 1
    %s1454 = scalar_lea.sflag [#allocation4], 1
    %1455 = vsyncpa %s1454, 1

</llo_original>
